<compile_context>
chip_gen: v7x
topology: tpu7x:2x2x1
jax: 0.10.0
libtpu: 0.0.40
codegen_flags: <defaults>
</compile_context>

<pallas_src>
import math
import jax
import jax.numpy as jnp
from jax.experimental import pallas as pl
from jax.experimental.pallas import tpu as pltpu

# ---- problem configuration (small, consistent with the module) -------------
B = 2          # batch
S = 8          # sequence length
E = 32         # emd_dim
NUM_HEAD = 4   # num_head
DK = E // NUM_HEAD
SCALE = 1.0 / math.sqrt(float(DK))


def mha_kernel(x_ref, w_ref, b_ref, out_ref):
    """Single-invocation fused MHA.

    x_ref : (3, B*S, E)  stacked [query; key; value] activations
    w_ref : (4, E, E)    pre-transposed (in, out) weights [Wq; Wk; Wv; Wo]
    b_ref : (4, 1, E)    biases [bq; bk; bv; bo]
    out_ref: (B*S, E)
    """
    # Input projections: y = x @ W_pretransposed + b   (== x @ W.T + b)
    q = jnp.dot(x_ref[0], w_ref[0], preferred_element_type=jnp.float32) + b_ref[0]
    k = jnp.dot(x_ref[1], w_ref[1], preferred_element_type=jnp.float32) + b_ref[1]
    v = jnp.dot(x_ref[2], w_ref[2], preferred_element_type=jnp.float32) + b_ref[2]

    # Batched per-head scaled dot-product attention (heads unrolled statically,
    # batch handled by a single 3-D einsum per head).
    q3 = q.reshape(B, S, E)
    k3 = k.reshape(B, S, E)
    v3 = v.reshape(B, S, E)

    head_outs = []
    for h in range(NUM_HEAD):
        lo = h * DK
        qh = q3[:, :, lo:lo + DK]            # (B, S, DK)
        kh = k3[:, :, lo:lo + DK]
        vh = v3[:, :, lo:lo + DK]

        s = jnp.einsum("bqd,bkd->bqk", qh, kh,
                       preferred_element_type=jnp.float32) * SCALE   # (B, S, S)

        # numerically stable softmax; reciprocal on the EUP slot
        m = jnp.max(s, axis=-1, keepdims=True)
        e = jnp.exp(s - m)
        denom = jnp.sum(e, axis=-1, keepdims=True)
        p = e * pl.reciprocal(denom, approx=True)

        head_outs.append(jnp.einsum("bqk,bkd->bqd", p, vh,
                                    preferred_element_type=jnp.float32))  # (B, S, DK)

    # Concatenating heads along the feature axis reproduces
    # .transpose(1, 2).contiguous().view(B, -1, nh) from the PyTorch code.
    ctx = jnp.concatenate(head_outs, axis=-1)        # (B, S, E)

    # Output projection
    out = jnp.dot(ctx.reshape(B * S, E), w_ref[3],
                  preferred_element_type=jnp.float32) + b_ref[3]
    out_ref[...] = out.astype(out_ref.dtype)

    # TODO(synk): optional `mask` argument of the PyTorch forward is not wired
    # through (mask=None path only).


def multi_head_attention(query, key, value, params):
    """query/key/value: (B, S, E) float32. params: PyTorch-convention weights."""
    # Host-side packing (free relative to the kernel): stack activations,
    # pre-transpose + stack weights, stack biases.
    x_stack = jnp.stack([query.reshape(B * S, E),
                         key.reshape(B * S, E),
                         value.reshape(B * S, E)], axis=0)             # (3, B*S, E)
    w_stack = jnp.stack([params["wq"].T, params["wk"].T,
                         params["wv"].T, params["wo"].T], axis=0)      # (4, E, E)
    b_stack = jnp.stack([params["bq"], params["bk"],
                         params["bv"], params["bo"]], axis=0)          # (4, 1, E)

    vmem_spec = pl.BlockSpec(memory_space=pltpu.MemorySpace.VMEM)
    out = pl.pallas_call(
        mha_kernel,
        out_shape=jax.ShapeDtypeStruct((B * S, E), jnp.float32),
        in_specs=[vmem_spec, vmem_spec, vmem_spec],
        out_specs=vmem_spec,
    )(x_stack, w_stack, b_stack)
    return out.reshape(B, S, E)


def reference_mha(query, key, value, params):
    """Pure-JAX reference matching the PyTorch forward exactly."""
    def linear(x, w, b):
        return x @ w.T + b[0]
    q = linear(query, params["wq"], params["bq"])
    k = linear(key, params["wk"], params["bk"])
    v = linear(value, params["wv"], params["bv"])
    q = q.reshape(B, S, NUM_HEAD, DK).transpose(0, 2, 1, 3)
    k = k.reshape(B, S, NUM_HEAD, DK).transpose(0, 2, 1, 3)
    v = v.reshape(B, S, NUM_HEAD, DK).transpose(0, 2, 1, 3)
    attn = jnp.einsum("bhqd,bhkd->bhqk", q, k) * SCALE
    attn = jax.nn.softmax(attn, axis=-1)
    ctx = jnp.einsum("bhqk,bhkd->bhqd", attn, v)
    ctx = ctx.transpose(0, 2, 1, 3).reshape(B, S, E)
    return linear(ctx, params["wo"], params["bo"])


def init_params(key):
    ks = jax.random.split(key, 8)
    bound = 1.0 / math.sqrt(E)
    u = lambda k, shape: jax.random.uniform(k, shape, jnp.float32, -bound, bound)
    return {
        "wq": u(ks[0], (E, E)), "bq": u(ks[1], (1, E)),
        "wk": u(ks[2], (E, E)), "bk": u(ks[3], (1, E)),
        "wv": u(ks[4], (E, E)), "bv": u(ks[5], (1, E)),
        "wo": u(ks[6], (E, E)), "bo": u(ks[7], (1, E)),
    }


if __name__ == "__main__":
    root = jax.random.PRNGKey(0)
    k_p, k_q, k_k, k_v = jax.random.split(root, 4)
    params = init_params(k_p)

    query = jax.random.normal(k_q, (B, S, E), jnp.float32)
    key_in = jax.random.normal(k_k, (B, S, E), jnp.float32)
    value = jax.random.normal(k_v, (B, S, E), jnp.float32)

    out = multi_head_attention(query, key_in, value, params)
    out = jax.block_until_ready(out)

    ref = reference_mha(query, key_in, value, params)
    assert out.shape == (B, S, E)
    # tolerance relaxed slightly vs 1e-4 because of approx (EUP) reciprocal
    assert jnp.allclose(out, ref, atol=2e-3, rtol=2e-3), "mismatch vs reference"

    print("KERNEL_OK")
</pallas_src>

<mosaic_0001>
module attributes {stable_mosaic.version = 11 : i64} {
  func.func @mha_kernel(%arg0: memref<3x16x32xf32, #tpu.memory_space<vmem>>, %arg1: memref<4x32x32xf32, #tpu.memory_space<vmem>>, %arg2: memref<4x1x32xf32, #tpu.memory_space<vmem>>, %arg3: memref<16x32xf32, #tpu.memory_space<vmem>>) attributes {dimension_semantics = [], scalar_prefetch = 0 : i64, scratch_operands = 0 : i64, tpu.core_type = #tpu.core_type<tc>} {
    %c0 = arith.constant 0 : index
    %c0_0 = arith.constant 0 : index
    %c0_1 = arith.constant 0 : index
    %0 = vector.load %arg0[%c0, %c0_0, %c0_1] : memref<3x16x32xf32, #tpu.memory_space<vmem>>, vector<1x16x32xf32>
    %1 = vector.shape_cast %0 : vector<1x16x32xf32> to vector<16x32xf32>
    %c0_2 = arith.constant 0 : index
    %c0_3 = arith.constant 0 : index
    %c0_4 = arith.constant 0 : index
    %2 = vector.load %arg1[%c0_2, %c0_3, %c0_4] : memref<4x32x32xf32, #tpu.memory_space<vmem>>, vector<1x32x32xf32>
    %3 = vector.shape_cast %2 : vector<1x32x32xf32> to vector<32x32xf32>
    %cst = arith.constant dense<0.000000e+00> : vector<16x32xf32>
    %4 = tpu.matmul %1, %3, %cst {dimension_numbers = #tpu.dot_dimension_numbers<[1], [0], [0], [1], [0, 0, 1, 1], [], []>} : vector<16x32xf32>, vector<32x32xf32>, vector<16x32xf32> -> vector<16x32xf32>
    %c0_5 = arith.constant 0 : index
    %c0_6 = arith.constant 0 : index
    %c0_7 = arith.constant 0 : index
    %5 = vector.load %arg2[%c0_5, %c0_6, %c0_7] : memref<4x1x32xf32, #tpu.memory_space<vmem>>, vector<1x1x32xf32>
    %6 = vector.shape_cast %5 : vector<1x1x32xf32> to vector<1x32xf32>
    %7 = vector.broadcast %6 : vector<1x32xf32> to vector<16x32xf32>
    %8 = arith.addf %4, %7 : vector<16x32xf32>
    %c1 = arith.constant 1 : index
    %c0_8 = arith.constant 0 : index
    %c0_9 = arith.constant 0 : index
    %9 = vector.load %arg0[%c1, %c0_8, %c0_9] : memref<3x16x32xf32, #tpu.memory_space<vmem>>, vector<1x16x32xf32>
    %10 = vector.shape_cast %9 : vector<1x16x32xf32> to vector<16x32xf32>
    %c1_10 = arith.constant 1 : index
    %c0_11 = arith.constant 0 : index
    %c0_12 = arith.constant 0 : index
    %11 = vector.load %arg1[%c1_10, %c0_11, %c0_12] : memref<4x32x32xf32, #tpu.memory_space<vmem>>, vector<1x32x32xf32>
    %12 = vector.shape_cast %11 : vector<1x32x32xf32> to vector<32x32xf32>
    %cst_13 = arith.constant dense<0.000000e+00> : vector<16x32xf32>
    %13 = tpu.matmul %10, %12, %cst_13 {dimension_numbers = #tpu.dot_dimension_numbers<[1], [0], [0], [1], [0, 0, 1, 1], [], []>} : vector<16x32xf32>, vector<32x32xf32>, vector<16x32xf32> -> vector<16x32xf32>
    %c1_14 = arith.constant 1 : index
    %c0_15 = arith.constant 0 : index
    %c0_16 = arith.constant 0 : index
    %14 = vector.load %arg2[%c1_14, %c0_15, %c0_16] : memref<4x1x32xf32, #tpu.memory_space<vmem>>, vector<1x1x32xf32>
    %15 = vector.shape_cast %14 : vector<1x1x32xf32> to vector<1x32xf32>
    %16 = vector.broadcast %15 : vector<1x32xf32> to vector<16x32xf32>
    %17 = arith.addf %13, %16 : vector<16x32xf32>
    %c2 = arith.constant 2 : index
    %c0_17 = arith.constant 0 : index
    %c0_18 = arith.constant 0 : index
    %18 = vector.load %arg0[%c2, %c0_17, %c0_18] : memref<3x16x32xf32, #tpu.memory_space<vmem>>, vector<1x16x32xf32>
    %19 = vector.shape_cast %18 : vector<1x16x32xf32> to vector<16x32xf32>
    %c2_19 = arith.constant 2 : index
    %c0_20 = arith.constant 0 : index
    %c0_21 = arith.constant 0 : index
    %20 = vector.load %arg1[%c2_19, %c0_20, %c0_21] : memref<4x32x32xf32, #tpu.memory_space<vmem>>, vector<1x32x32xf32>
    %21 = vector.shape_cast %20 : vector<1x32x32xf32> to vector<32x32xf32>
    %cst_22 = arith.constant dense<0.000000e+00> : vector<16x32xf32>
    %22 = tpu.matmul %19, %21, %cst_22 {dimension_numbers = #tpu.dot_dimension_numbers<[1], [0], [0], [1], [0, 0, 1, 1], [], []>} : vector<16x32xf32>, vector<32x32xf32>, vector<16x32xf32> -> vector<16x32xf32>
    %c2_23 = arith.constant 2 : index
    %c0_24 = arith.constant 0 : index
    %c0_25 = arith.constant 0 : index
    %23 = vector.load %arg2[%c2_23, %c0_24, %c0_25] : memref<4x1x32xf32, #tpu.memory_space<vmem>>, vector<1x1x32xf32>
    %24 = vector.shape_cast %23 : vector<1x1x32xf32> to vector<1x32xf32>
    %25 = vector.broadcast %24 : vector<1x32xf32> to vector<16x32xf32>
    %26 = arith.addf %22, %25 : vector<16x32xf32>
    %27 = vector.shape_cast %8 : vector<16x32xf32> to vector<2x8x32xf32>
    %28 = vector.shape_cast %17 : vector<16x32xf32> to vector<2x8x32xf32>
    %29 = vector.shape_cast %26 : vector<16x32xf32> to vector<2x8x32xf32>
    %30 = vector.extract_strided_slice %27 {offsets = [0, 0, 0], sizes = [2, 8, 8], strides = [1, 1, 1]} : vector<2x8x32xf32> to vector<2x8x8xf32>
    %31 = vector.extract_strided_slice %28 {offsets = [0, 0, 0], sizes = [2, 8, 8], strides = [1, 1, 1]} : vector<2x8x32xf32> to vector<2x8x8xf32>
    %32 = vector.extract_strided_slice %29 {offsets = [0, 0, 0], sizes = [2, 8, 8], strides = [1, 1, 1]} : vector<2x8x32xf32> to vector<2x8x8xf32>
    "tpu.trace_start"() <{level = 10 : i32, message = "bqd,bkd->bqk"}> : () -> ()
    %cst_26 = arith.constant dense<0.000000e+00> : vector<2x8x8xf32>
    %33 = tpu.matmul %30, %31, %cst_26 {dimension_numbers = #tpu.dot_dimension_numbers<[2], [2], [1], [1], [0, 0, 0, 1, 1, 1], [0], [0]>} : vector<2x8x8xf32>, vector<2x8x8xf32>, vector<2x8x8xf32> -> vector<2x8x8xf32>
    "tpu.trace_stop"() : () -> ()
    %cst_27 = arith.constant 0.353553385 : f32
    %34 = vector.broadcast %cst_27 : f32 to vector<2x8x8xf32>
    %35 = arith.mulf %33, %34 : vector<2x8x8xf32>
    %cst_28 = arith.constant dense<0xFF800000> : vector<2x8xf32>
    %36 = vector.multi_reduction <maximumf>, %35, %cst_28 [2] : vector<2x8x8xf32> to vector<2x8xf32>
    %37 = vector.shape_cast %36 : vector<2x8xf32> to vector<2x8x1xf32>
    %38 = vector.broadcast %37 : vector<2x8x1xf32> to vector<2x8x8xf32>
    %39 = arith.subf %35, %38 : vector<2x8x8xf32>
    %40 = math.exp %39 : vector<2x8x8xf32>
    %cst_29 = arith.constant dense<0.000000e+00> : vector<2x8xf32>
    %41 = vector.multi_reduction <add>, %40, %cst_29 [2] : vector<2x8x8xf32> to vector<2x8xf32>
    %42 = vector.shape_cast %41 : vector<2x8xf32> to vector<2x8x1xf32>
    %43 = tpu.reciprocal %42 {approx = true} : vector<2x8x1xf32> -> vector<2x8x1xf32>
    %44 = vector.broadcast %43 : vector<2x8x1xf32> to vector<2x8x8xf32>
    %45 = arith.mulf %40, %44 : vector<2x8x8xf32>
    "tpu.trace_start"() <{level = 10 : i32, message = "bqk,bkd->bqd"}> : () -> ()
    %cst_30 = arith.constant dense<0.000000e+00> : vector<2x8x8xf32>
    %46 = tpu.matmul %45, %32, %cst_30 {dimension_numbers = #tpu.dot_dimension_numbers<[2], [1], [1], [2], [0, 0, 0, 1, 1, 2], [0], [0]>} : vector<2x8x8xf32>, vector<2x8x8xf32>, vector<2x8x8xf32> -> vector<2x8x8xf32>
    "tpu.trace_stop"() : () -> ()
    %47 = vector.extract_strided_slice %27 {offsets = [0, 0, 8], sizes = [2, 8, 8], strides = [1, 1, 1]} : vector<2x8x32xf32> to vector<2x8x8xf32>
    %48 = vector.extract_strided_slice %28 {offsets = [0, 0, 8], sizes = [2, 8, 8], strides = [1, 1, 1]} : vector<2x8x32xf32> to vector<2x8x8xf32>
    %49 = vector.extract_strided_slice %29 {offsets = [0, 0, 8], sizes = [2, 8, 8], strides = [1, 1, 1]} : vector<2x8x32xf32> to vector<2x8x8xf32>
    "tpu.trace_start"() <{level = 10 : i32, message = "bqd,bkd->bqk"}> : () -> ()
    %cst_31 = arith.constant dense<0.000000e+00> : vector<2x8x8xf32>
    %50 = tpu.matmul %47, %48, %cst_31 {dimension_numbers = #tpu.dot_dimension_numbers<[2], [2], [1], [1], [0, 0, 0, 1, 1, 1], [0], [0]>} : vector<2x8x8xf32>, vector<2x8x8xf32>, vector<2x8x8xf32> -> vector<2x8x8xf32>
    "tpu.trace_stop"() : () -> ()
    %cst_32 = arith.constant 0.353553385 : f32
    %51 = vector.broadcast %cst_32 : f32 to vector<2x8x8xf32>
    %52 = arith.mulf %50, %51 : vector<2x8x8xf32>
    %cst_33 = arith.constant dense<0xFF800000> : vector<2x8xf32>
    %53 = vector.multi_reduction <maximumf>, %52, %cst_33 [2] : vector<2x8x8xf32> to vector<2x8xf32>
    %54 = vector.shape_cast %53 : vector<2x8xf32> to vector<2x8x1xf32>
    %55 = vector.broadcast %54 : vector<2x8x1xf32> to vector<2x8x8xf32>
    %56 = arith.subf %52, %55 : vector<2x8x8xf32>
    %57 = math.exp %56 : vector<2x8x8xf32>
    %cst_34 = arith.constant dense<0.000000e+00> : vector<2x8xf32>
    %58 = vector.multi_reduction <add>, %57, %cst_34 [2] : vector<2x8x8xf32> to vector<2x8xf32>
    %59 = vector.shape_cast %58 : vector<2x8xf32> to vector<2x8x1xf32>
    %60 = tpu.reciprocal %59 {approx = true} : vector<2x8x1xf32> -> vector<2x8x1xf32>
    %61 = vector.broadcast %60 : vector<2x8x1xf32> to vector<2x8x8xf32>
    %62 = arith.mulf %57, %61 : vector<2x8x8xf32>
    "tpu.trace_start"() <{level = 10 : i32, message = "bqk,bkd->bqd"}> : () -> ()
    %cst_35 = arith.constant dense<0.000000e+00> : vector<2x8x8xf32>
    %63 = tpu.matmul %62, %49, %cst_35 {dimension_numbers = #tpu.dot_dimension_numbers<[2], [1], [1], [2], [0, 0, 0, 1, 1, 2], [0], [0]>} : vector<2x8x8xf32>, vector<2x8x8xf32>, vector<2x8x8xf32> -> vector<2x8x8xf32>
    "tpu.trace_stop"() : () -> ()
    %64 = vector.extract_strided_slice %27 {offsets = [0, 0, 16], sizes = [2, 8, 8], strides = [1, 1, 1]} : vector<2x8x32xf32> to vector<2x8x8xf32>
    %65 = vector.extract_strided_slice %28 {offsets = [0, 0, 16], sizes = [2, 8, 8], strides = [1, 1, 1]} : vector<2x8x32xf32> to vector<2x8x8xf32>
    %66 = vector.extract_strided_slice %29 {offsets = [0, 0, 16], sizes = [2, 8, 8], strides = [1, 1, 1]} : vector<2x8x32xf32> to vector<2x8x8xf32>
    "tpu.trace_start"() <{level = 10 : i32, message = "bqd,bkd->bqk"}> : () -> ()
    %cst_36 = arith.constant dense<0.000000e+00> : vector<2x8x8xf32>
    %67 = tpu.matmul %64, %65, %cst_36 {dimension_numbers = #tpu.dot_dimension_numbers<[2], [2], [1], [1], [0, 0, 0, 1, 1, 1], [0], [0]>} : vector<2x8x8xf32>, vector<2x8x8xf32>, vector<2x8x8xf32> -> vector<2x8x8xf32>
    "tpu.trace_stop"() : () -> ()
    %cst_37 = arith.constant 0.353553385 : f32
    %68 = vector.broadcast %cst_37 : f32 to vector<2x8x8xf32>
    %69 = arith.mulf %67, %68 : vector<2x8x8xf32>
    %cst_38 = arith.constant dense<0xFF800000> : vector<2x8xf32>
    %70 = vector.multi_reduction <maximumf>, %69, %cst_38 [2] : vector<2x8x8xf32> to vector<2x8xf32>
    %71 = vector.shape_cast %70 : vector<2x8xf32> to vector<2x8x1xf32>
    %72 = vector.broadcast %71 : vector<2x8x1xf32> to vector<2x8x8xf32>
    %73 = arith.subf %69, %72 : vector<2x8x8xf32>
    %74 = math.exp %73 : vector<2x8x8xf32>
    %cst_39 = arith.constant dense<0.000000e+00> : vector<2x8xf32>
    %75 = vector.multi_reduction <add>, %74, %cst_39 [2] : vector<2x8x8xf32> to vector<2x8xf32>
    %76 = vector.shape_cast %75 : vector<2x8xf32> to vector<2x8x1xf32>
    %77 = tpu.reciprocal %76 {approx = true} : vector<2x8x1xf32> -> vector<2x8x1xf32>
    %78 = vector.broadcast %77 : vector<2x8x1xf32> to vector<2x8x8xf32>
    %79 = arith.mulf %74, %78 : vector<2x8x8xf32>
    "tpu.trace_start"() <{level = 10 : i32, message = "bqk,bkd->bqd"}> : () -> ()
    %cst_40 = arith.constant dense<0.000000e+00> : vector<2x8x8xf32>
    %80 = tpu.matmul %79, %66, %cst_40 {dimension_numbers = #tpu.dot_dimension_numbers<[2], [1], [1], [2], [0, 0, 0, 1, 1, 2], [0], [0]>} : vector<2x8x8xf32>, vector<2x8x8xf32>, vector<2x8x8xf32> -> vector<2x8x8xf32>
    "tpu.trace_stop"() : () -> ()
    %81 = vector.extract_strided_slice %27 {offsets = [0, 0, 24], sizes = [2, 8, 8], strides = [1, 1, 1]} : vector<2x8x32xf32> to vector<2x8x8xf32>
    %82 = vector.extract_strided_slice %28 {offsets = [0, 0, 24], sizes = [2, 8, 8], strides = [1, 1, 1]} : vector<2x8x32xf32> to vector<2x8x8xf32>
    %83 = vector.extract_strided_slice %29 {offsets = [0, 0, 24], sizes = [2, 8, 8], strides = [1, 1, 1]} : vector<2x8x32xf32> to vector<2x8x8xf32>
    "tpu.trace_start"() <{level = 10 : i32, message = "bqd,bkd->bqk"}> : () -> ()
    %cst_41 = arith.constant dense<0.000000e+00> : vector<2x8x8xf32>
    %84 = tpu.matmul %81, %82, %cst_41 {dimension_numbers = #tpu.dot_dimension_numbers<[2], [2], [1], [1], [0, 0, 0, 1, 1, 1], [0], [0]>} : vector<2x8x8xf32>, vector<2x8x8xf32>, vector<2x8x8xf32> -> vector<2x8x8xf32>
    "tpu.trace_stop"() : () -> ()
    %cst_42 = arith.constant 0.353553385 : f32
    %85 = vector.broadcast %cst_42 : f32 to vector<2x8x8xf32>
    %86 = arith.mulf %84, %85 : vector<2x8x8xf32>
    %cst_43 = arith.constant dense<0xFF800000> : vector<2x8xf32>
    %87 = vector.multi_reduction <maximumf>, %86, %cst_43 [2] : vector<2x8x8xf32> to vector<2x8xf32>
    %88 = vector.shape_cast %87 : vector<2x8xf32> to vector<2x8x1xf32>
    %89 = vector.broadcast %88 : vector<2x8x1xf32> to vector<2x8x8xf32>
    %90 = arith.subf %86, %89 : vector<2x8x8xf32>
    %91 = math.exp %90 : vector<2x8x8xf32>
    %cst_44 = arith.constant dense<0.000000e+00> : vector<2x8xf32>
    %92 = vector.multi_reduction <add>, %91, %cst_44 [2] : vector<2x8x8xf32> to vector<2x8xf32>
    %93 = vector.shape_cast %92 : vector<2x8xf32> to vector<2x8x1xf32>
    %94 = tpu.reciprocal %93 {approx = true} : vector<2x8x1xf32> -> vector<2x8x1xf32>
    %95 = vector.broadcast %94 : vector<2x8x1xf32> to vector<2x8x8xf32>
    %96 = arith.mulf %91, %95 : vector<2x8x8xf32>
    "tpu.trace_start"() <{level = 10 : i32, message = "bqk,bkd->bqd"}> : () -> ()
    %cst_45 = arith.constant dense<0.000000e+00> : vector<2x8x8xf32>
    %97 = tpu.matmul %96, %83, %cst_45 {dimension_numbers = #tpu.dot_dimension_numbers<[2], [1], [1], [2], [0, 0, 0, 1, 1, 2], [0], [0]>} : vector<2x8x8xf32>, vector<2x8x8xf32>, vector<2x8x8xf32> -> vector<2x8x8xf32>
    "tpu.trace_stop"() : () -> ()
    %98 = tpu.concatenate %46, %63, %80, %97 in 2 : vector<2x8x8xf32>, vector<2x8x8xf32>, vector<2x8x8xf32>, vector<2x8x8xf32> -> vector<2x8x32xf32>
    %99 = vector.shape_cast %98 : vector<2x8x32xf32> to vector<16x32xf32>
    %c3 = arith.constant 3 : index
    %c0_46 = arith.constant 0 : index
    %c0_47 = arith.constant 0 : index
    %100 = vector.load %arg1[%c3, %c0_46, %c0_47] : memref<4x32x32xf32, #tpu.memory_space<vmem>>, vector<1x32x32xf32>
    %101 = vector.shape_cast %100 : vector<1x32x32xf32> to vector<32x32xf32>
    %cst_48 = arith.constant dense<0.000000e+00> : vector<16x32xf32>
    %102 = tpu.matmul %99, %101, %cst_48 {dimension_numbers = #tpu.dot_dimension_numbers<[1], [0], [0], [1], [0, 0, 1, 1], [], []>} : vector<16x32xf32>, vector<32x32xf32>, vector<16x32xf32> -> vector<16x32xf32>
    %c3_49 = arith.constant 3 : index
    %c0_50 = arith.constant 0 : index
    %c0_51 = arith.constant 0 : index
    %103 = vector.load %arg2[%c3_49, %c0_50, %c0_51] : memref<4x1x32xf32, #tpu.memory_space<vmem>>, vector<1x1x32xf32>
    %104 = vector.shape_cast %103 : vector<1x1x32xf32> to vector<1x32xf32>
    %105 = vector.broadcast %104 : vector<1x32xf32> to vector<16x32xf32>
    %106 = arith.addf %102, %105 : vector<16x32xf32>
    %c0_52 = arith.constant 0 : index
    %c0_53 = arith.constant 0 : index
    %107 = vector.load %arg3[%c0_52, %c0_53] : memref<16x32xf32, #tpu.memory_space<vmem>>, vector<16x32xf32>
    tpu.vector_store %arg3[%c0_52, %c0_53], %106 {strides = array<i32>} : memref<16x32xf32, #tpu.memory_space<vmem>>, vector<16x32xf32>,
    return
  }
}

</mosaic_0001>

<llo_original>
// kernel: tpu_custom_call.1
$region0: #{tpu_custom_call.1}
  #allocation0 [shape = 'u32[]', space=smem, size = 0x4, offset = 0x4, fixed_abs, tag = 'smem constant byte address 0x4 - core index']
  #allocation1 [shape = 'u32[144,128]{1,0:T(1,128)}', space=vmem, size = 0x12000, scoped, tag = 'internal scratch']
  %s0 = inlined_call_operand.hbm [shape: f32[3,16,32], index: 0, kind: input, shape index: {}]
  %s1 = inlined_call_operand.hbm [shape: f32[4,32,32], index: 1, kind: input, shape index: {}]
  %s2 = inlined_call_operand.vmem [shape: f32[4,1,32], index: 2, kind: input, shape index: {}]
  %s3 = inlined_call_operand.hbm [shape: f32[16,32], index: 3, kind: output, shape index: {}]
  %s4 = sld [smem:[#allocation0]]
  $region30: #{tpu_custom_call.1} parent=0
    _
  %s6 = ssub.s32 1, %s4
  %s7 = scalar_select 0, %s6, %s4
  $region1: #{tpu_custom_call.1} parent=0
    #allocation2 [shape = 'u8[24576]{0}', space=vmem, size = 0x6000, scoped, tag = 'input window, operand 0, single buffered']
    #allocation3 [shape = 's32[1]{0}', space=sflag, size = 0x4, scoped, tag = 'scoped memory for tpu_custom_call.1']
    #allocation4 [shape = 's32[1]{0}', space=sflag, size = 0x4, scoped, tag = 'scoped memory for tpu_custom_call.1']
    #allocation5 [shape = 'u8[65536]{0}', space=vmem, size = 0x10000, scoped, tag = 'input window, operand 1, single buffered']
    #allocation6 [shape = 's32[1]{0}', space=sflag, size = 0x4, scoped, tag = 'scoped memory for tpu_custom_call.1']
    #allocation7 [shape = 'u8[8192]{0}', space=vmem, size = 0x2000, scoped, tag = 'output window, operand 0, single buffered']
    %8 = vsyncpa [#allocation3], 0
    %9 = vsyncpa [#allocation6], 0
    %10 = vsyncpa [#allocation4], 0
    // Predicated region
    $region2: #{tpu_custom_call.1} parent=1 // pred_check
      _
    $region3: #{tpu_custom_call.1} parent=1 // pred_check_branch
      %12 = sbr.rel (0) target = $region5
    $region4: #{tpu_custom_call.1} parent=1 // pred_region
      %s14 = ssub.s32 768, 768
      %15 = vsyncadd [#allocation3], %s14
      %s16 = sshll.u32 [#allocation2], 4
      %s17 = int_to_ptr.vmem [resolvable:$true] %s16
      %22 = dma.hbm_to_vmem [thread:$0]  %s0, 768, %s17, [#allocation3], 128, 128, 8
    $region5: #{tpu_custom_call.1} parent=1 // pred_fallthru
      _
    // Predicated region
    $region6: #{tpu_custom_call.1} parent=1 // pred_check
      _
    $region7: #{tpu_custom_call.1} parent=1 // pred_check_branch
      %24 = sbr.rel (0) target = $region9
    $region8: #{tpu_custom_call.1} parent=1 // pred_region
      %s26 = ssub.s32 2048, 2048
      %27 = vsyncadd [#allocation6], %s26
      %s28 = sshll.u32 [#allocation5], 4
      %s29 = int_to_ptr.vmem [resolvable:$true] %s28
      %34 = dma.hbm_to_vmem [thread:$0]  %s1, 2048, %s29, [#allocation6], 128, 128, 8
    $region9: #{tpu_custom_call.1} parent=1 // pred_fallthru
      _
    // Predicated region
    $region10: #{tpu_custom_call.1} parent=1 // pred_check
      _
    $region11: #{tpu_custom_call.1} parent=1 // pred_check_branch
      %36 = sbr.rel (0) target = $region13
    $region12: #{tpu_custom_call.1} parent=1 // pred_region
      _
    $region13: #{tpu_custom_call.1} parent=1 // pred_fallthru
      _
    // Predicated region
    $region14: #{tpu_custom_call.1} parent=1 // pred_check
      _
    $region15: #{tpu_custom_call.1} parent=1 // pred_check_branch
      %38 = sbr.rel (0) target = $region17
    $region16: #{tpu_custom_call.1} parent=1 // pred_region
      %39 = dma.done [#allocation3], 768
    $region17: #{tpu_custom_call.1} parent=1 // pred_fallthru
      _
    // Predicated region
    $region18: #{tpu_custom_call.1} parent=1 // pred_check
      _
    $region19: #{tpu_custom_call.1} parent=1 // pred_check_branch
      %41 = sbr.rel (0) target = $region21
    $region20: #{tpu_custom_call.1} parent=1 // pred_region
      %42 = dma.done [#allocation6], 2048
    $region21: #{tpu_custom_call.1} parent=1 // pred_fallthru
      _
    %v43 = vld [vmem:[#allocation2] sm:$0xff]
    %v44 = vld [vmem:[#allocation2 + $0x8] sm:$0xff]
    %v45 = vld [vmem:[#allocation5] sm:$0xff]
    %v46 = vld [vmem:[#allocation5 + $0x8] sm:$0xff]
    %v47 = vld [vmem:[#allocation5 + $0x10] sm:$0xff]
    %v48 = vld [vmem:[#allocation5 + $0x18] sm:$0xff]
    %v49 = vld [vmem:[%s2] sm:$0x1]
    %v51 = vlaneseq
    %v52 = vshrl.u32 %v51, 7
    %v53 = vsub.s32 0, %v52
    %v54 = vrot.slane %v49, %v53
    %vm56 = vcmask 261120
    %v58 = vsel %vm56, %v43, 0
    %v61 = vsel %vm56, %v44, 0
    %63 = vmatprep.subr.mxu0 0.0
    %64 = vmatpush1.msra.mxu0 %v45
    %65 = vmatprep.subr.mxu0 0.0
    %66 = vmatpush1.msra.mxu0 %v46
    %67 = vmatprep.subr.mxu0 0.0
    %68 = vmatpush1.msra.mxu0 %v47
    %69 = vmatprep.subr.mxu0 0.0
    %70 = vmatpush1.msra.mxu0 %v48
    %71 = vmatprep.subr.mxu0 0.0
    %72 = vmatpush1.msra.mxu0 0.0
    %73 = vmatprep.subr.mxu0 0.0
    %74 = vmatpush1.msra.mxu0 0.0
    %75 = vmatprep.subr.mxu0 0.0
    %76 = vmatpush1.msra.mxu0 0.0
    %77 = vmatprep.subr.mxu0 0.0
    %78 = vmatpush1.msra.mxu0 0.0
    %79 = vmatprep.subr.mxu0 0.0
    %80 = vmatpush1.msra.mxu0 0.0
    %81 = vmatprep.subr.mxu0 0.0
    %82 = vmatpush1.msra.mxu0 0.0
    %83 = vmatprep.subr.mxu0 0.0
    %84 = vmatpush1.msra.mxu0 0.0
    %85 = vmatprep.subr.mxu0 0.0
    %86 = vmatpush1.msra.mxu0 0.0
    %87 = vmatprep.subr.mxu0 0.0
    %88 = vmatpush1.msra.mxu0 0.0
    %89 = vmatprep.subr.mxu0 0.0
    %90 = vmatpush1.msra.mxu0 0.0
    %91 = vmatprep.subr.mxu0 0.0
    %92 = vmatpush1.msra.mxu0 0.0
    %93 = vmatprep.subr.mxu0 0.0
    %94 = vmatpush1.msra.mxu0 0.0
    %95 = vmatprep.subr.mxu0 0.0
    %96 = vmatpush1.msra.mxu0 0.0
    %97 = vmatprep.subr.mxu0 0.0
    %98 = vmatpush1.msra.mxu0 0.0
    %99 = vmatprep.subr.mxu0 0.0
    %100 = vmatpush1.msra.mxu0 0.0
    %101 = vmatprep.subr.mxu0 0.0
    %102 = vmatpush1.msra.mxu0 0.0
    %103 = vmatprep.subr.mxu0 0.0
    %104 = vmatpush1.msra.mxu0 0.0
    %105 = vmatprep.subr.mxu0 0.0
    %106 = vmatpush1.msra.mxu0 0.0
    %107 = vmatprep.subr.mxu0 0.0
    %108 = vmatpush1.msra.mxu0 0.0
    %109 = vmatprep.subr.mxu0 0.0
    %110 = vmatpush1.msra.mxu0 0.0
    %111 = vmatprep.subr.mxu0 0.0
    %112 = vmatpush1.msra.mxu0 0.0
    %113 = vmatprep.subr.mxu0 0.0
    %114 = vmatpush1.msra.mxu0 0.0
    %115 = vmatprep.subr.mxu0 0.0
    %116 = vmatpush1.msra.mxu0 0.0
    %117 = vmatprep.subr.mxu0 0.0
    %118 = vmatpush1.msra.mxu0 0.0
    %119 = vmatprep.subr.mxu0 0.0
    %120 = vmatpush1.msra.mxu0 0.0
    %121 = vmatprep.subr.mxu0 0.0
    %122 = vmatpush1.msra.mxu0 0.0
    %123 = vmatprep.subr.mxu0 0.0
    %124 = vmatpush1.msra.mxu0 0.0
    %125 = vmatprep.subr.mxu0 0.0
    %126 = vmatpush1.msra.mxu0 0.0
    %127 = vmatprep.mubr.f32.mxu0 0.0
    %128 = vmatmul.mubr.f32.gmra.mrb[0].mxu0 %v58
    %v129 = vpop.f32.mrb[0].mxu0
    %v130 = vadd.f32 %v54, %v129
    %v131 = vpop.f32.mrb[0].mxu0
    %132 = vmatprep.mubr.f32.mxu0 0.0
    %133 = vmatmul.mubr.f32.gmra.mrb[0].mxu0 %v61
    %v134 = vpop.f32.mrb[0].mxu0
    %v135 = vadd.f32 %v54, %v134
    %v136 = vpop.f32.mrb[0].mxu0
    %137 = vdwg.mxu0
    %s138 = scalar_lea.vmem [#allocation2], 16
    %v139 = vld [vmem:[%s138] sm:$0xff]
    %v140 = vld [vmem:[%s138 + $0x8] sm:$0xff]
    %s141 = scalar_lea.vmem [#allocation5], 32
    %v142 = vld [vmem:[%s141] sm:$0xff]
    %v143 = vld [vmem:[%s141 + $0x8] sm:$0xff]
    %v144 = vld [vmem:[%s141 + $0x10] sm:$0xff]
    %v145 = vld [vmem:[%s141 + $0x18] sm:$0xff]
    %s146 = scalar_lea.vmem %s2, 1
    %v147 = vld [vmem:[%s146] sm:$0x1]
    %v149 = vlaneseq
    %v150 = vshrl.u32 %v149, 7
    %v151 = vsub.s32 0, %v150
    %v152 = vrot.slane %v147, %v151
    %v155 = vsel %vm56, %v139, 0
    %v158 = vsel %vm56, %v140, 0
    %160 = vmatprep.subr.mxu0 0.0
    %161 = vmatpush1.msra.mxu0 %v142
    %162 = vmatprep.subr.mxu0 0.0
    %163 = vmatpush1.msra.mxu0 %v143
    %164 = vmatprep.subr.mxu0 0.0
    %165 = vmatpush1.msra.mxu0 %v144
    %166 = vmatprep.subr.mxu0 0.0
    %167 = vmatpush1.msra.mxu0 %v145
    %168 = vmatprep.subr.mxu0 0.0
    %169 = vmatpush1.msra.mxu0 0.0
    %170 = vmatprep.subr.mxu0 0.0
    %171 = vmatpush1.msra.mxu0 0.0
    %172 = vmatprep.subr.mxu0 0.0
    %173 = vmatpush1.msra.mxu0 0.0
    %174 = vmatprep.subr.mxu0 0.0
    %175 = vmatpush1.msra.mxu0 0.0
    %176 = vmatprep.subr.mxu0 0.0
    %177 = vmatpush1.msra.mxu0 0.0
    %178 = vmatprep.subr.mxu0 0.0
    %179 = vmatpush1.msra.mxu0 0.0
    %180 = vmatprep.subr.mxu0 0.0
    %181 = vmatpush1.msra.mxu0 0.0
    %182 = vmatprep.subr.mxu0 0.0
    %183 = vmatpush1.msra.mxu0 0.0
    %184 = vmatprep.subr.mxu0 0.0
    %185 = vmatpush1.msra.mxu0 0.0
    %186 = vmatprep.subr.mxu0 0.0
    %187 = vmatpush1.msra.mxu0 0.0
    %188 = vmatprep.subr.mxu0 0.0
    %189 = vmatpush1.msra.mxu0 0.0
    %190 = vmatprep.subr.mxu0 0.0
    %191 = vmatpush1.msra.mxu0 0.0
    %192 = vmatprep.subr.mxu0 0.0
    %193 = vmatpush1.msra.mxu0 0.0
    %194 = vmatprep.subr.mxu0 0.0
    %195 = vmatpush1.msra.mxu0 0.0
    %196 = vmatprep.subr.mxu0 0.0
    %197 = vmatpush1.msra.mxu0 0.0
    %198 = vmatprep.subr.mxu0 0.0
    %199 = vmatpush1.msra.mxu0 0.0
    %200 = vmatprep.subr.mxu0 0.0
    %201 = vmatpush1.msra.mxu0 0.0
    %202 = vmatprep.subr.mxu0 0.0
    %203 = vmatpush1.msra.mxu0 0.0
    %204 = vmatprep.subr.mxu0 0.0
    %205 = vmatpush1.msra.mxu0 0.0
    %206 = vmatprep.subr.mxu0 0.0
    %207 = vmatpush1.msra.mxu0 0.0
    %208 = vmatprep.subr.mxu0 0.0
    %209 = vmatpush1.msra.mxu0 0.0
    %210 = vmatprep.subr.mxu0 0.0
    %211 = vmatpush1.msra.mxu0 0.0
    %212 = vmatprep.subr.mxu0 0.0
    %213 = vmatpush1.msra.mxu0 0.0
    %214 = vmatprep.subr.mxu0 0.0
    %215 = vmatpush1.msra.mxu0 0.0
    %216 = vmatprep.subr.mxu0 0.0
    %217 = vmatpush1.msra.mxu0 0.0
    %218 = vmatprep.subr.mxu0 0.0
    %219 = vmatpush1.msra.mxu0 0.0
    %220 = vmatprep.subr.mxu0 0.0
    %221 = vmatpush1.msra.mxu0 0.0
    %222 = vmatprep.subr.mxu0 0.0
    %223 = vmatpush1.msra.mxu0 0.0
    %224 = vmatprep.mubr.f32.mxu0 0.0
    %225 = vmatmul.mubr.f32.gmra.mrb[0].mxu0 %v155
    %v226 = vpop.f32.mrb[0].mxu0
    %v227 = vadd.f32 %v152, %v226
    %v228 = vpop.f32.mrb[0].mxu0
    %229 = vmatprep.mubr.f32.mxu0 0.0
    %230 = vmatmul.mubr.f32.gmra.mrb[0].mxu0 %v158
    %v231 = vpop.f32.mrb[0].mxu0
    %v232 = vadd.f32 %v152, %v231
    %v233 = vpop.f32.mrb[0].mxu0
    %234 = vdwg.mxu0
    %s235 = scalar_lea.vmem [#allocation2], 32
    %v236 = vld [vmem:[%s235] sm:$0xff]
    %v237 = vld [vmem:[%s235 + $0x8] sm:$0xff]
    %s238 = scalar_lea.vmem [#allocation5], 64
    %v239 = vld [vmem:[%s238] sm:$0xff]
    %v240 = vld [vmem:[%s238 + $0x8] sm:$0xff]
    %v241 = vld [vmem:[%s238 + $0x10] sm:$0xff]
    %v242 = vld [vmem:[%s238 + $0x18] sm:$0xff]
    %s243 = scalar_lea.vmem %s2, 2
    %v244 = vld [vmem:[%s243] sm:$0x1]
    %v246 = vlaneseq
    %v247 = vshrl.u32 %v246, 7
    %v248 = vsub.s32 0, %v247
    %v249 = vrot.slane %v244, %v248
    %v252 = vsel %vm56, %v236, 0
    %v255 = vsel %vm56, %v237, 0
    %257 = vmatprep.subr.mxu0 0.0
    %258 = vmatpush1.msra.mxu0 %v239
    %259 = vmatprep.subr.mxu0 0.0
    %260 = vmatpush1.msra.mxu0 %v240
    %261 = vmatprep.subr.mxu0 0.0
    %262 = vmatpush1.msra.mxu0 %v241
    %263 = vmatprep.subr.mxu0 0.0
    %264 = vmatpush1.msra.mxu0 %v242
    %265 = vmatprep.subr.mxu0 0.0
    %266 = vmatpush1.msra.mxu0 0.0
    %267 = vmatprep.subr.mxu0 0.0
    %268 = vmatpush1.msra.mxu0 0.0
    %269 = vmatprep.subr.mxu0 0.0
    %270 = vmatpush1.msra.mxu0 0.0
    %271 = vmatprep.subr.mxu0 0.0
    %272 = vmatpush1.msra.mxu0 0.0
    %273 = vmatprep.subr.mxu0 0.0
    %274 = vmatpush1.msra.mxu0 0.0
    %275 = vmatprep.subr.mxu0 0.0
    %276 = vmatpush1.msra.mxu0 0.0
    %277 = vmatprep.subr.mxu0 0.0
    %278 = vmatpush1.msra.mxu0 0.0
    %279 = vmatprep.subr.mxu0 0.0
    %280 = vmatpush1.msra.mxu0 0.0
    %281 = vmatprep.subr.mxu0 0.0
    %282 = vmatpush1.msra.mxu0 0.0
    %283 = vmatprep.subr.mxu0 0.0
    %284 = vmatpush1.msra.mxu0 0.0
    %285 = vmatprep.subr.mxu0 0.0
    %286 = vmatpush1.msra.mxu0 0.0
    %287 = vmatprep.subr.mxu0 0.0
    %288 = vmatpush1.msra.mxu0 0.0
    %289 = vmatprep.subr.mxu0 0.0
    %290 = vmatpush1.msra.mxu0 0.0
    %291 = vmatprep.subr.mxu0 0.0
    %292 = vmatpush1.msra.mxu0 0.0
    %293 = vmatprep.subr.mxu0 0.0
    %294 = vmatpush1.msra.mxu0 0.0
    %295 = vmatprep.subr.mxu0 0.0
    %296 = vmatpush1.msra.mxu0 0.0
    %297 = vmatprep.subr.mxu0 0.0
    %298 = vmatpush1.msra.mxu0 0.0
    %299 = vmatprep.subr.mxu0 0.0
    %300 = vmatpush1.msra.mxu0 0.0
    %301 = vmatprep.subr.mxu0 0.0
    %302 = vmatpush1.msra.mxu0 0.0
    %303 = vmatprep.subr.mxu0 0.0
    %304 = vmatpush1.msra.mxu0 0.0
    %305 = vmatprep.subr.mxu0 0.0
    %306 = vmatpush1.msra.mxu0 0.0
    %307 = vmatprep.subr.mxu0 0.0
    %308 = vmatpush1.msra.mxu0 0.0
    %309 = vmatprep.subr.mxu0 0.0
    %310 = vmatpush1.msra.mxu0 0.0
    %311 = vmatprep.subr.mxu0 0.0
    %312 = vmatpush1.msra.mxu0 0.0
    %313 = vmatprep.subr.mxu0 0.0
    %314 = vmatpush1.msra.mxu0 0.0
    %315 = vmatprep.subr.mxu0 0.0
    %316 = vmatpush1.msra.mxu0 0.0
    %317 = vmatprep.subr.mxu0 0.0
    %318 = vmatpush1.msra.mxu0 0.0
    %319 = vmatprep.subr.mxu0 0.0
    %320 = vmatpush1.msra.mxu0 0.0
    %321 = vmatprep.mubr.f32.mxu0 0.0
    %322 = vmatmul.mubr.f32.gmra.mrb[0].mxu0 %v252
    %v323 = vpop.f32.mrb[0].mxu0
    %v324 = vadd.f32 %v249, %v323
    %v325 = vpop.f32.mrb[0].mxu0
    %326 = vmatprep.mubr.f32.mxu0 0.0
    %327 = vmatmul.mubr.f32.gmra.mrb[0].mxu0 %v255
    %v328 = vpop.f32.mrb[0].mxu0
    %v329 = vadd.f32 %v249, %v328
    %v330 = vpop.f32.mrb[0].mxu0
    %331 = vdwg.mxu0
    %vm332 = vcmask 64512
    %v334 = vsel %vm332, %v130, 0
    %v337 = vsel %vm332, %v227, 0
    %339 = vmatprep.subr.mxu0 0.0
    %340 = vmatpush1.xpose.msra.mxu0 %v337
    %341 = vmatprep.subr.mxu0 0.0
    %342 = vmatpush1.xpose.msra.mxu0 0.0
    %343 = vmatprep.subr.mxu0 0.0
    %344 = vmatpush1.xpose.msra.mxu0 0.0
    %345 = vmatprep.subr.mxu0 0.0
    %346 = vmatpush1.xpose.msra.mxu0 0.0
    %347 = vmatprep.subr.mxu0 0.0
    %348 = vmatpush1.xpose.msra.mxu0 0.0
    %349 = vmatprep.subr.mxu0 0.0
    %350 = vmatpush1.xpose.msra.mxu0 0.0
    %351 = vmatprep.subr.mxu0 0.0
    %352 = vmatpush1.xpose.msra.mxu0 0.0
    %353 = vmatprep.subr.mxu0 0.0
    %354 = vmatpush1.xpose.msra.mxu0 0.0
    %355 = vmatprep.subr.mxu0 0.0
    %356 = vmatpush1.xpose.msra.mxu0 0.0
    %357 = vmatprep.subr.mxu0 0.0
    %358 = vmatpush1.xpose.msra.mxu0 0.0
    %359 = vmatprep.subr.mxu0 0.0
    %360 = vmatpush1.xpose.msra.mxu0 0.0
    %361 = vmatprep.subr.mxu0 0.0
    %362 = vmatpush1.xpose.msra.mxu0 0.0
    %363 = vmatprep.subr.mxu0 0.0
    %364 = vmatpush1.xpose.msra.mxu0 0.0
    %365 = vmatprep.subr.mxu0 0.0
    %366 = vmatpush1.xpose.msra.mxu0 0.0
    %367 = vmatprep.subr.mxu0 0.0
    %368 = vmatpush1.xpose.msra.mxu0 0.0
    %369 = vmatprep.subr.mxu0 0.0
    %370 = vmatpush1.xpose.msra.mxu0 0.0
    %371 = vmatprep.subr.mxu0 0.0
    %372 = vmatpush1.xpose.msra.mxu0 0.0
    %373 = vmatprep.subr.mxu0 0.0
    %374 = vmatpush1.xpose.msra.mxu0 0.0
    %375 = vmatprep.subr.mxu0 0.0
    %376 = vmatpush1.xpose.msra.mxu0 0.0
    %377 = vmatprep.subr.mxu0 0.0
    %378 = vmatpush1.xpose.msra.mxu0 0.0
    %379 = vmatprep.subr.mxu0 0.0
    %380 = vmatpush1.xpose.msra.mxu0 0.0
    %381 = vmatprep.subr.mxu0 0.0
    %382 = vmatpush1.xpose.msra.mxu0 0.0
    %383 = vmatprep.subr.mxu0 0.0
    %384 = vmatpush1.xpose.msra.mxu0 0.0
    %385 = vmatprep.subr.mxu0 0.0
    %386 = vmatpush1.xpose.msra.mxu0 0.0
    %387 = vmatprep.subr.mxu0 0.0
    %388 = vmatpush1.xpose.msra.mxu0 0.0
    %389 = vmatprep.subr.mxu0 0.0
    %390 = vmatpush1.xpose.msra.mxu0 0.0
    %391 = vmatprep.subr.mxu0 0.0
    %392 = vmatpush1.xpose.msra.mxu0 0.0
    %393 = vmatprep.subr.mxu0 0.0
    %394 = vmatpush1.xpose.msra.mxu0 0.0
    %395 = vmatprep.subr.mxu0 0.0
    %396 = vmatpush1.xpose.msra.mxu0 0.0
    %397 = vmatprep.subr.mxu0 0.0
    %398 = vmatpush1.xpose.msra.mxu0 0.0
    %399 = vmatprep.subr.mxu0 0.0
    %400 = vmatpush1.xpose.msra.mxu0 0.0
    %401 = vmatprep.subr.mxu0 0.0
    %402 = vmatpush1.xpose.msra.mxu0 0.0
    %403 = vmatprep.mubr.f32.mxu0 0.0
    %404 = vmatmul.mubr.f32.gmra.mrb[0].mxu0 %v334
    %v405 = vpop.f32.mrb[0].mxu0
    %v406 = vadd.f32 0.0, %v405
    %v407 = vpop.f32.mrb[0].mxu0
    %408 = vdwg.mxu0
    %v410 = vsel %vm332, %v135, 0
    %v413 = vsel %vm332, %v232, 0
    %415 = vmatprep.subr.mxu0 0.0
    %416 = vmatpush1.xpose.msra.mxu0 %v413
    %417 = vmatprep.subr.mxu0 0.0
    %418 = vmatpush1.xpose.msra.mxu0 0.0
    %419 = vmatprep.subr.mxu0 0.0
    %420 = vmatpush1.xpose.msra.mxu0 0.0
    %421 = vmatprep.subr.mxu0 0.0
    %422 = vmatpush1.xpose.msra.mxu0 0.0
    %423 = vmatprep.subr.mxu0 0.0
    %424 = vmatpush1.xpose.msra.mxu0 0.0
    %425 = vmatprep.subr.mxu0 0.0
    %426 = vmatpush1.xpose.msra.mxu0 0.0
    %427 = vmatprep.subr.mxu0 0.0
    %428 = vmatpush1.xpose.msra.mxu0 0.0
    %429 = vmatprep.subr.mxu0 0.0
    %430 = vmatpush1.xpose.msra.mxu0 0.0
    %431 = vmatprep.subr.mxu0 0.0
    %432 = vmatpush1.xpose.msra.mxu0 0.0
    %433 = vmatprep.subr.mxu0 0.0
    %434 = vmatpush1.xpose.msra.mxu0 0.0
    %435 = vmatprep.subr.mxu0 0.0
    %436 = vmatpush1.xpose.msra.mxu0 0.0
    %437 = vmatprep.subr.mxu0 0.0
    %438 = vmatpush1.xpose.msra.mxu0 0.0
    %439 = vmatprep.subr.mxu0 0.0
    %440 = vmatpush1.xpose.msra.mxu0 0.0
    %441 = vmatprep.subr.mxu0 0.0
    %442 = vmatpush1.xpose.msra.mxu0 0.0
    %443 = vmatprep.subr.mxu0 0.0
    %444 = vmatpush1.xpose.msra.mxu0 0.0
    %445 = vmatprep.subr.mxu0 0.0
    %446 = vmatpush1.xpose.msra.mxu0 0.0
    %447 = vmatprep.subr.mxu0 0.0
    %448 = vmatpush1.xpose.msra.mxu0 0.0
    %449 = vmatprep.subr.mxu0 0.0
    %450 = vmatpush1.xpose.msra.mxu0 0.0
    %451 = vmatprep.subr.mxu0 0.0
    %452 = vmatpush1.xpose.msra.mxu0 0.0
    %453 = vmatprep.subr.mxu0 0.0
    %454 = vmatpush1.xpose.msra.mxu0 0.0
    %455 = vmatprep.subr.mxu0 0.0
    %456 = vmatpush1.xpose.msra.mxu0 0.0
    %457 = vmatprep.subr.mxu0 0.0
    %458 = vmatpush1.xpose.msra.mxu0 0.0
    %459 = vmatprep.subr.mxu0 0.0
    %460 = vmatpush1.xpose.msra.mxu0 0.0
    %461 = vmatprep.subr.mxu0 0.0
    %462 = vmatpush1.xpose.msra.mxu0 0.0
    %463 = vmatprep.subr.mxu0 0.0
    %464 = vmatpush1.xpose.msra.mxu0 0.0
    %465 = vmatprep.subr.mxu0 0.0
    %466 = vmatpush1.xpose.msra.mxu0 0.0
    %467 = vmatprep.subr.mxu0 0.0
    %468 = vmatpush1.xpose.msra.mxu0 0.0
    %469 = vmatprep.subr.mxu0 0.0
    %470 = vmatpush1.xpose.msra.mxu0 0.0
    %471 = vmatprep.subr.mxu0 0.0
    %472 = vmatpush1.xpose.msra.mxu0 0.0
    %473 = vmatprep.subr.mxu0 0.0
    %474 = vmatpush1.xpose.msra.mxu0 0.0
    %475 = vmatprep.subr.mxu0 0.0
    %476 = vmatpush1.xpose.msra.mxu0 0.0
    %477 = vmatprep.subr.mxu0 0.0
    %478 = vmatpush1.xpose.msra.mxu0 0.0
    %479 = vmatprep.mubr.f32.mxu0 0.0
    %480 = vmatmul.mubr.f32.gmra.mrb[0].mxu0 %v410
    %v481 = vpop.f32.mrb[0].mxu0
    %v482 = vadd.f32 0.0, %v481
    %v483 = vpop.f32.mrb[0].mxu0
    %484 = vdwg.mxu0
    %v485 = vmul.f32 %v406, 0.35355338
    %v486 = vmul.f32 %v482, 0.35355338
    %v487 = vsel %vm332, %v485, -inf
    %488 = vmax.xlane.f32.xlu0 %v487
    %v489 = vpop.xlane.xlu0 %488
    %v490 = vsel %vm332, %v486, -inf
    %491 = vmax.xlane.f32.xlu0 %v490
    %v492 = vpop.xlane.xlu0 %491
    %v493 = vsub.f32 %v485, %v489
    %v494 = vsub.f32 %v486, %v492
    %v495 = vmul.f32 %v493, 1.442695
    %v496 = vpow.pop %v495
    %v497 = vmul.f32 %v494, 1.442695
    %v498 = vpow.pop %v497
    %v499 = vsel %vm332, %v496, 0.0
    %500 = vadd.xlane.f32.xlu0 %v499
    %v501 = vpop.xlane.xlu0 %500
    %v502 = vsel %vm332, %v498, 0.0
    %503 = vadd.xlane.f32.xlu0 %v502
    %v504 = vpop.xlane.xlu0 %503
    %v505 = vrcp.pop %v501
    %v506 = vrcp.pop %v504
    %v507 = vmul.f32 %v496, %v505
    %v508 = vmul.f32 %v498, %v506
    %v510 = vsel %vm332, %v507, 0
    %512 = vmatprep.subr.mxu0 0.0
    %513 = vmatpush1.msra.mxu0 %v324
    %514 = vmatprep.subr.mxu0 0.0
    %515 = vmatpush1.msra.mxu0 0.0
    %516 = vmatprep.subr.mxu0 0.0
    %517 = vmatpush1.msra.mxu0 0.0
    %518 = vmatprep.subr.mxu0 0.0
    %519 = vmatpush1.msra.mxu0 0.0
    %520 = vmatprep.subr.mxu0 0.0
    %521 = vmatpush1.msra.mxu0 0.0
    %522 = vmatprep.subr.mxu0 0.0
    %523 = vmatpush1.msra.mxu0 0.0
    %524 = vmatprep.subr.mxu0 0.0
    %525 = vmatpush1.msra.mxu0 0.0
    %526 = vmatprep.subr.mxu0 0.0
    %527 = vmatpush1.msra.mxu0 0.0
    %528 = vmatprep.subr.mxu0 0.0
    %529 = vmatpush1.msra.mxu0 0.0
    %530 = vmatprep.subr.mxu0 0.0
    %531 = vmatpush1.msra.mxu0 0.0
    %532 = vmatprep.subr.mxu0 0.0
    %533 = vmatpush1.msra.mxu0 0.0
    %534 = vmatprep.subr.mxu0 0.0
    %535 = vmatpush1.msra.mxu0 0.0
    %536 = vmatprep.subr.mxu0 0.0
    %537 = vmatpush1.msra.mxu0 0.0
    %538 = vmatprep.subr.mxu0 0.0
    %539 = vmatpush1.msra.mxu0 0.0
    %540 = vmatprep.subr.mxu0 0.0
    %541 = vmatpush1.msra.mxu0 0.0
    %542 = vmatprep.subr.mxu0 0.0
    %543 = vmatpush1.msra.mxu0 0.0
    %544 = vmatprep.subr.mxu0 0.0
    %545 = vmatpush1.msra.mxu0 0.0
    %546 = vmatprep.subr.mxu0 0.0
    %547 = vmatpush1.msra.mxu0 0.0
    %548 = vmatprep.subr.mxu0 0.0
    %549 = vmatpush1.msra.mxu0 0.0
    %550 = vmatprep.subr.mxu0 0.0
    %551 = vmatpush1.msra.mxu0 0.0
    %552 = vmatprep.subr.mxu0 0.0
    %553 = vmatpush1.msra.mxu0 0.0
    %554 = vmatprep.subr.mxu0 0.0
    %555 = vmatpush1.msra.mxu0 0.0
    %556 = vmatprep.subr.mxu0 0.0
    %557 = vmatpush1.msra.mxu0 0.0
    %558 = vmatprep.subr.mxu0 0.0
    %559 = vmatpush1.msra.mxu0 0.0
    %560 = vmatprep.subr.mxu0 0.0
    %561 = vmatpush1.msra.mxu0 0.0
    %562 = vmatprep.subr.mxu0 0.0
    %563 = vmatpush1.msra.mxu0 0.0
    %564 = vmatprep.subr.mxu0 0.0
    %565 = vmatpush1.msra.mxu0 0.0
    %566 = vmatprep.subr.mxu0 0.0
    %567 = vmatpush1.msra.mxu0 0.0
    %568 = vmatprep.subr.mxu0 0.0
    %569 = vmatpush1.msra.mxu0 0.0
    %570 = vmatprep.subr.mxu0 0.0
    %571 = vmatpush1.msra.mxu0 0.0
    %572 = vmatprep.subr.mxu0 0.0
    %573 = vmatpush1.msra.mxu0 0.0
    %574 = vmatprep.subr.mxu0 0.0
    %575 = vmatpush1.msra.mxu0 0.0
    %576 = vmatprep.mubr.f32.mxu0 0.0
    %577 = vmatmul.mubr.f32.gmra.mrb[0].mxu0 %v510
    %v578 = vpop.f32.mrb[0].mxu0
    %v579 = vadd.f32 0.0, %v578
    %v580 = vpop.f32.mrb[0].mxu0
    %581 = vdwg.mxu0
    %v583 = vsel %vm332, %v508, 0
    %585 = vmatprep.subr.mxu0 0.0
    %586 = vmatpush1.msra.mxu0 %v329
    %587 = vmatprep.subr.mxu0 0.0
    %588 = vmatpush1.msra.mxu0 0.0
    %589 = vmatprep.subr.mxu0 0.0
    %590 = vmatpush1.msra.mxu0 0.0
    %591 = vmatprep.subr.mxu0 0.0
    %592 = vmatpush1.msra.mxu0 0.0
    %593 = vmatprep.subr.mxu0 0.0
    %594 = vmatpush1.msra.mxu0 0.0
    %595 = vmatprep.subr.mxu0 0.0
    %596 = vmatpush1.msra.mxu0 0.0
    %597 = vmatprep.subr.mxu0 0.0
    %598 = vmatpush1.msra.mxu0 0.0
    %599 = vmatprep.subr.mxu0 0.0
    %600 = vmatpush1.msra.mxu0 0.0
    %601 = vmatprep.subr.mxu0 0.0
    %602 = vmatpush1.msra.mxu0 0.0
    %603 = vmatprep.subr.mxu0 0.0
    %604 = vmatpush1.msra.mxu0 0.0
    %605 = vmatprep.subr.mxu0 0.0
    %606 = vmatpush1.msra.mxu0 0.0
    %607 = vmatprep.subr.mxu0 0.0
    %608 = vmatpush1.msra.mxu0 0.0
    %609 = vmatprep.subr.mxu0 0.0
    %610 = vmatpush1.msra.mxu0 0.0
    %611 = vmatprep.subr.mxu0 0.0
    %612 = vmatpush1.msra.mxu0 0.0
    %613 = vmatprep.subr.mxu0 0.0
    %614 = vmatpush1.msra.mxu0 0.0
    %615 = vmatprep.subr.mxu0 0.0
    %616 = vmatpush1.msra.mxu0 0.0
    %617 = vmatprep.subr.mxu0 0.0
    %618 = vmatpush1.msra.mxu0 0.0
    %619 = vmatprep.subr.mxu0 0.0
    %620 = vmatpush1.msra.mxu0 0.0
    %621 = vmatprep.subr.mxu0 0.0
    %622 = vmatpush1.msra.mxu0 0.0
    %623 = vmatprep.subr.mxu0 0.0
    %624 = vmatpush1.msra.mxu0 0.0
    %625 = vmatprep.subr.mxu0 0.0
    %626 = vmatpush1.msra.mxu0 0.0
    %627 = vmatprep.subr.mxu0 0.0
    %628 = vmatpush1.msra.mxu0 0.0
    %629 = vmatprep.subr.mxu0 0.0
    %630 = vmatpush1.msra.mxu0 0.0
    %631 = vmatprep.subr.mxu0 0.0
    %632 = vmatpush1.msra.mxu0 0.0
    %633 = vmatprep.subr.mxu0 0.0
    %634 = vmatpush1.msra.mxu0 0.0
    %635 = vmatprep.subr.mxu0 0.0
    %636 = vmatpush1.msra.mxu0 0.0
    %637 = vmatprep.subr.mxu0 0.0
    %638 = vmatpush1.msra.mxu0 0.0
    %639 = vmatprep.subr.mxu0 0.0
    %640 = vmatpush1.msra.mxu0 0.0
    %641 = vmatprep.subr.mxu0 0.0
    %642 = vmatpush1.msra.mxu0 0.0
    %643 = vmatprep.subr.mxu0 0.0
    %644 = vmatpush1.msra.mxu0 0.0
    %645 = vmatprep.subr.mxu0 0.0
    %646 = vmatpush1.msra.mxu0 0.0
    %647 = vmatprep.subr.mxu0 0.0
    %648 = vmatpush1.msra.mxu0 0.0
    %649 = vmatprep.mubr.f32.mxu0 0.0
    %650 = vmatmul.mubr.f32.gmra.mrb[0].mxu0 %v583
    %v651 = vpop.f32.mrb[0].mxu0
    %v652 = vadd.f32 0.0, %v651
    %v653 = vpop.f32.mrb[0].mxu0
    %654 = vdwg.mxu0
    %655 = vrot.lane.b32.xlu0 %v130, 120
    %v656 = vpop.permute.xlu0 %655
    %657 = vrot.lane.b32.xlu0 %v227, 120
    %v658 = vpop.permute.xlu0 %657
    %v659 = vsel %vm332, %v656, 0
    %v661 = vsel %vm332, %v658, 0
    %663 = vmatprep.subr.mxu0 0.0
    %664 = vmatpush1.xpose.msra.mxu0 %v661
    %665 = vmatprep.subr.mxu0 0.0
    %666 = vmatpush1.xpose.msra.mxu0 0.0
    %667 = vmatprep.subr.mxu0 0.0
    %668 = vmatpush1.xpose.msra.mxu0 0.0
    %669 = vmatprep.subr.mxu0 0.0
    %670 = vmatpush1.xpose.msra.mxu0 0.0
    %671 = vmatprep.subr.mxu0 0.0
    %672 = vmatpush1.xpose.msra.mxu0 0.0
    %673 = vmatprep.subr.mxu0 0.0
    %674 = vmatpush1.xpose.msra.mxu0 0.0
    %675 = vmatprep.subr.mxu0 0.0
    %676 = vmatpush1.xpose.msra.mxu0 0.0
    %677 = vmatprep.subr.mxu0 0.0
    %678 = vmatpush1.xpose.msra.mxu0 0.0
    %679 = vmatprep.subr.mxu0 0.0
    %680 = vmatpush1.xpose.msra.mxu0 0.0
    %681 = vmatprep.subr.mxu0 0.0
    %682 = vmatpush1.xpose.msra.mxu0 0.0
    %683 = vmatprep.subr.mxu0 0.0
    %684 = vmatpush1.xpose.msra.mxu0 0.0
    %685 = vmatprep.subr.mxu0 0.0
    %686 = vmatpush1.xpose.msra.mxu0 0.0
    %687 = vmatprep.subr.mxu0 0.0
    %688 = vmatpush1.xpose.msra.mxu0 0.0
    %689 = vmatprep.subr.mxu0 0.0
    %690 = vmatpush1.xpose.msra.mxu0 0.0
    %691 = vmatprep.subr.mxu0 0.0
    %692 = vmatpush1.xpose.msra.mxu0 0.0
    %693 = vmatprep.subr.mxu0 0.0
    %694 = vmatpush1.xpose.msra.mxu0 0.0
    %695 = vmatprep.subr.mxu0 0.0
    %696 = vmatpush1.xpose.msra.mxu0 0.0
    %697 = vmatprep.subr.mxu0 0.0
    %698 = vmatpush1.xpose.msra.mxu0 0.0
    %699 = vmatprep.subr.mxu0 0.0
    %700 = vmatpush1.xpose.msra.mxu0 0.0
    %701 = vmatprep.subr.mxu0 0.0
    %702 = vmatpush1.xpose.msra.mxu0 0.0
    %703 = vmatprep.subr.mxu0 0.0
    %704 = vmatpush1.xpose.msra.mxu0 0.0
    %705 = vmatprep.subr.mxu0 0.0
    %706 = vmatpush1.xpose.msra.mxu0 0.0
    %707 = vmatprep.subr.mxu0 0.0
    %708 = vmatpush1.xpose.msra.mxu0 0.0
    %709 = vmatprep.subr.mxu0 0.0
    %710 = vmatpush1.xpose.msra.mxu0 0.0
    %711 = vmatprep.subr.mxu0 0.0
    %712 = vmatpush1.xpose.msra.mxu0 0.0
    %713 = vmatprep.subr.mxu0 0.0
    %714 = vmatpush1.xpose.msra.mxu0 0.0
    %715 = vmatprep.subr.mxu0 0.0
    %716 = vmatpush1.xpose.msra.mxu0 0.0
    %717 = vmatprep.subr.mxu0 0.0
    %718 = vmatpush1.xpose.msra.mxu0 0.0
    %719 = vmatprep.subr.mxu0 0.0
    %720 = vmatpush1.xpose.msra.mxu0 0.0
    %721 = vmatprep.subr.mxu0 0.0
    %722 = vmatpush1.xpose.msra.mxu0 0.0
    %723 = vmatprep.subr.mxu0 0.0
    %724 = vmatpush1.xpose.msra.mxu0 0.0
    %725 = vmatprep.subr.mxu0 0.0
    %726 = vmatpush1.xpose.msra.mxu0 0.0
    %727 = vmatprep.mubr.f32.mxu0 0.0
    %728 = vmatmul.mubr.f32.gmra.mrb[0].mxu0 %v659
    %v729 = vpop.f32.mrb[0].mxu0
    %v730 = vadd.f32 0.0, %v729
    %v731 = vpop.f32.mrb[0].mxu0
    %732 = vdwg.mxu0
    %733 = vrot.lane.b32.xlu0 %v135, 120
    %v734 = vpop.permute.xlu0 %733
    %735 = vrot.lane.b32.xlu0 %v232, 120
    %v736 = vpop.permute.xlu0 %735
    %v737 = vsel %vm332, %v734, 0
    %v739 = vsel %vm332, %v736, 0
    %741 = vmatprep.subr.mxu0 0.0
    %742 = vmatpush1.xpose.msra.mxu0 %v739
    %743 = vmatprep.subr.mxu0 0.0
    %744 = vmatpush1.xpose.msra.mxu0 0.0
    %745 = vmatprep.subr.mxu0 0.0
    %746 = vmatpush1.xpose.msra.mxu0 0.0
    %747 = vmatprep.subr.mxu0 0.0
    %748 = vmatpush1.xpose.msra.mxu0 0.0
    %749 = vmatprep.subr.mxu0 0.0
    %750 = vmatpush1.xpose.msra.mxu0 0.0
    %751 = vmatprep.subr.mxu0 0.0
    %752 = vmatpush1.xpose.msra.mxu0 0.0
    %753 = vmatprep.subr.mxu0 0.0
    %754 = vmatpush1.xpose.msra.mxu0 0.0
    %755 = vmatprep.subr.mxu0 0.0
    %756 = vmatpush1.xpose.msra.mxu0 0.0
    %757 = vmatprep.subr.mxu0 0.0
    %758 = vmatpush1.xpose.msra.mxu0 0.0
    %759 = vmatprep.subr.mxu0 0.0
    %760 = vmatpush1.xpose.msra.mxu0 0.0
    %761 = vmatprep.subr.mxu0 0.0
    %762 = vmatpush1.xpose.msra.mxu0 0.0
    %763 = vmatprep.subr.mxu0 0.0
    %764 = vmatpush1.xpose.msra.mxu0 0.0
    %765 = vmatprep.subr.mxu0 0.0
    %766 = vmatpush1.xpose.msra.mxu0 0.0
    %767 = vmatprep.subr.mxu0 0.0
    %768 = vmatpush1.xpose.msra.mxu0 0.0
    %769 = vmatprep.subr.mxu0 0.0
    %770 = vmatpush1.xpose.msra.mxu0 0.0
    %771 = vmatprep.subr.mxu0 0.0
    %772 = vmatpush1.xpose.msra.mxu0 0.0
    %773 = vmatprep.subr.mxu0 0.0
    %774 = vmatpush1.xpose.msra.mxu0 0.0
    %775 = vmatprep.subr.mxu0 0.0
    %776 = vmatpush1.xpose.msra.mxu0 0.0
    %777 = vmatprep.subr.mxu0 0.0
    %778 = vmatpush1.xpose.msra.mxu0 0.0
    %779 = vmatprep.subr.mxu0 0.0
    %780 = vmatpush1.xpose.msra.mxu0 0.0
    %781 = vmatprep.subr.mxu0 0.0
    %782 = vmatpush1.xpose.msra.mxu0 0.0
    %783 = vmatprep.subr.mxu0 0.0
    %784 = vmatpush1.xpose.msra.mxu0 0.0
    %785 = vmatprep.subr.mxu0 0.0
    %786 = vmatpush1.xpose.msra.mxu0 0.0
    %787 = vmatprep.subr.mxu0 0.0
    %788 = vmatpush1.xpose.msra.mxu0 0.0
    %789 = vmatprep.subr.mxu0 0.0
    %790 = vmatpush1.xpose.msra.mxu0 0.0
    %791 = vmatprep.subr.mxu0 0.0
    %792 = vmatpush1.xpose.msra.mxu0 0.0
    %793 = vmatprep.subr.mxu0 0.0
    %794 = vmatpush1.xpose.msra.mxu0 0.0
    %795 = vmatprep.subr.mxu0 0.0
    %796 = vmatpush1.xpose.msra.mxu0 0.0
    %797 = vmatprep.subr.mxu0 0.0
    %798 = vmatpush1.xpose.msra.mxu0 0.0
    %799 = vmatprep.subr.mxu0 0.0
    %800 = vmatpush1.xpose.msra.mxu0 0.0
    %801 = vmatprep.subr.mxu0 0.0
    %802 = vmatpush1.xpose.msra.mxu0 0.0
    %803 = vmatprep.subr.mxu0 0.0
    %804 = vmatpush1.xpose.msra.mxu0 0.0
    %805 = vmatprep.mubr.f32.mxu0 0.0
    %806 = vmatmul.mubr.f32.gmra.mrb[0].mxu0 %v737
    %v807 = vpop.f32.mrb[0].mxu0
    %v808 = vadd.f32 0.0, %v807
    %v809 = vpop.f32.mrb[0].mxu0
    %810 = vdwg.mxu0
    %v811 = vmul.f32 %v730, 0.35355338
    %v812 = vmul.f32 %v808, 0.35355338
    %v813 = vsel %vm332, %v811, -inf
    %814 = vmax.xlane.f32.xlu0 %v813
    %v815 = vpop.xlane.xlu0 %814
    %v816 = vsel %vm332, %v812, -inf
    %817 = vmax.xlane.f32.xlu0 %v816
    %v818 = vpop.xlane.xlu0 %817
    %v819 = vsub.f32 %v811, %v815
    %v820 = vsub.f32 %v812, %v818
    %v821 = vmul.f32 %v819, 1.442695
    %v822 = vpow.pop %v821
    %v823 = vmul.f32 %v820, 1.442695
    %v824 = vpow.pop %v823
    %v825 = vsel %vm332, %v822, 0.0
    %826 = vadd.xlane.f32.xlu0 %v825
    %v827 = vpop.xlane.xlu0 %826
    %v828 = vsel %vm332, %v824, 0.0
    %829 = vadd.xlane.f32.xlu0 %v828
    %v830 = vpop.xlane.xlu0 %829
    %v831 = vrcp.pop %v827
    %v832 = vrcp.pop %v830
    %v833 = vmul.f32 %v822, %v831
    %v834 = vmul.f32 %v824, %v832
    %836 = vrot.lane.b32.xlu0 %v324, 120
    %v837 = vpop.permute.xlu0 %836
    %v840 = vsel %vm332, %v833, 0
    %842 = vmatprep.subr.mxu0 0.0
    %843 = vmatpush1.msra.mxu0 %v837
    %844 = vmatprep.subr.mxu0 0.0
    %845 = vmatpush1.msra.mxu0 0.0
    %846 = vmatprep.subr.mxu0 0.0
    %847 = vmatpush1.msra.mxu0 0.0
    %848 = vmatprep.subr.mxu0 0.0
    %849 = vmatpush1.msra.mxu0 0.0
    %850 = vmatprep.subr.mxu0 0.0
    %851 = vmatpush1.msra.mxu0 0.0
    %852 = vmatprep.subr.mxu0 0.0
    %853 = vmatpush1.msra.mxu0 0.0
    %854 = vmatprep.subr.mxu0 0.0
    %855 = vmatpush1.msra.mxu0 0.0
    %856 = vmatprep.subr.mxu0 0.0
    %857 = vmatpush1.msra.mxu0 0.0
    %858 = vmatprep.subr.mxu0 0.0
    %859 = vmatpush1.msra.mxu0 0.0
    %860 = vmatprep.subr.mxu0 0.0
    %861 = vmatpush1.msra.mxu0 0.0
    %862 = vmatprep.subr.mxu0 0.0
    %863 = vmatpush1.msra.mxu0 0.0
    %864 = vmatprep.subr.mxu0 0.0
    %865 = vmatpush1.msra.mxu0 0.0
    %866 = vmatprep.subr.mxu0 0.0
    %867 = vmatpush1.msra.mxu0 0.0
    %868 = vmatprep.subr.mxu0 0.0
    %869 = vmatpush1.msra.mxu0 0.0
    %870 = vmatprep.subr.mxu0 0.0
    %871 = vmatpush1.msra.mxu0 0.0
    %872 = vmatprep.subr.mxu0 0.0
    %873 = vmatpush1.msra.mxu0 0.0
    %874 = vmatprep.subr.mxu0 0.0
    %875 = vmatpush1.msra.mxu0 0.0
    %876 = vmatprep.subr.mxu0 0.0
    %877 = vmatpush1.msra.mxu0 0.0
    %878 = vmatprep.subr.mxu0 0.0
    %879 = vmatpush1.msra.mxu0 0.0
    %880 = vmatprep.subr.mxu0 0.0
    %881 = vmatpush1.msra.mxu0 0.0
    %882 = vmatprep.subr.mxu0 0.0
    %883 = vmatpush1.msra.mxu0 0.0
    %884 = vmatprep.subr.mxu0 0.0
    %885 = vmatpush1.msra.mxu0 0.0
    %886 = vmatprep.subr.mxu0 0.0
    %887 = vmatpush1.msra.mxu0 0.0
    %888 = vmatprep.subr.mxu0 0.0
    %889 = vmatpush1.msra.mxu0 0.0
    %890 = vmatprep.subr.mxu0 0.0
    %891 = vmatpush1.msra.mxu0 0.0
    %892 = vmatprep.subr.mxu0 0.0
    %893 = vmatpush1.msra.mxu0 0.0
    %894 = vmatprep.subr.mxu0 0.0
    %895 = vmatpush1.msra.mxu0 0.0
    %896 = vmatprep.subr.mxu0 0.0
    %897 = vmatpush1.msra.mxu0 0.0
    %898 = vmatprep.subr.mxu0 0.0
    %899 = vmatpush1.msra.mxu0 0.0
    %900 = vmatprep.subr.mxu0 0.0
    %901 = vmatpush1.msra.mxu0 0.0
    %902 = vmatprep.subr.mxu0 0.0
    %903 = vmatpush1.msra.mxu0 0.0
    %904 = vmatprep.subr.mxu0 0.0
    %905 = vmatpush1.msra.mxu0 0.0
    %906 = vmatprep.mubr.f32.mxu0 0.0
    %907 = vmatmul.mubr.f32.gmra.mrb[0].mxu0 %v840
    %v908 = vpop.f32.mrb[0].mxu0
    %v909 = vadd.f32 0.0, %v908
    %v910 = vpop.f32.mrb[0].mxu0
    %911 = vdwg.mxu0
    %913 = vrot.lane.b32.xlu0 %v329, 120
    %v914 = vpop.permute.xlu0 %913
    %v917 = vsel %vm332, %v834, 0
    %919 = vmatprep.subr.mxu0 0.0
    %920 = vmatpush1.msra.mxu0 %v914
    %921 = vmatprep.subr.mxu0 0.0
    %922 = vmatpush1.msra.mxu0 0.0
    %923 = vmatprep.subr.mxu0 0.0
    %924 = vmatpush1.msra.mxu0 0.0
    %925 = vmatprep.subr.mxu0 0.0
    %926 = vmatpush1.msra.mxu0 0.0
    %927 = vmatprep.subr.mxu0 0.0
    %928 = vmatpush1.msra.mxu0 0.0
    %929 = vmatprep.subr.mxu0 0.0
    %930 = vmatpush1.msra.mxu0 0.0
    %931 = vmatprep.subr.mxu0 0.0
    %932 = vmatpush1.msra.mxu0 0.0
    %933 = vmatprep.subr.mxu0 0.0
    %934 = vmatpush1.msra.mxu0 0.0
    %935 = vmatprep.subr.mxu0 0.0
    %936 = vmatpush1.msra.mxu0 0.0
    %937 = vmatprep.subr.mxu0 0.0
    %938 = vmatpush1.msra.mxu0 0.0
    %939 = vmatprep.subr.mxu0 0.0
    %940 = vmatpush1.msra.mxu0 0.0
    %941 = vmatprep.subr.mxu0 0.0
    %942 = vmatpush1.msra.mxu0 0.0
    %943 = vmatprep.subr.mxu0 0.0
    %944 = vmatpush1.msra.mxu0 0.0
    %945 = vmatprep.subr.mxu0 0.0
    %946 = vmatpush1.msra.mxu0 0.0
    %947 = vmatprep.subr.mxu0 0.0
    %948 = vmatpush1.msra.mxu0 0.0
    %949 = vmatprep.subr.mxu0 0.0
    %950 = vmatpush1.msra.mxu0 0.0
    %951 = vmatprep.subr.mxu0 0.0
    %952 = vmatpush1.msra.mxu0 0.0
    %953 = vmatprep.subr.mxu0 0.0
    %954 = vmatpush1.msra.mxu0 0.0
    %955 = vmatprep.subr.mxu0 0.0
    %956 = vmatpush1.msra.mxu0 0.0
    %957 = vmatprep.subr.mxu0 0.0
    %958 = vmatpush1.msra.mxu0 0.0
    %959 = vmatprep.subr.mxu0 0.0
    %960 = vmatpush1.msra.mxu0 0.0
    %961 = vmatprep.subr.mxu0 0.0
    %962 = vmatpush1.msra.mxu0 0.0
    %963 = vmatprep.subr.mxu0 0.0
    %964 = vmatpush1.msra.mxu0 0.0
    %965 = vmatprep.subr.mxu0 0.0
    %966 = vmatpush1.msra.mxu0 0.0
    %967 = vmatprep.subr.mxu0 0.0
    %968 = vmatpush1.msra.mxu0 0.0
    %969 = vmatprep.subr.mxu0 0.0
    %970 = vmatpush1.msra.mxu0 0.0
    %971 = vmatprep.subr.mxu0 0.0
    %972 = vmatpush1.msra.mxu0 0.0
    %973 = vmatprep.subr.mxu0 0.0
    %974 = vmatpush1.msra.mxu0 0.0
    %975 = vmatprep.subr.mxu0 0.0
    %976 = vmatpush1.msra.mxu0 0.0
    %977 = vmatprep.subr.mxu0 0.0
    %978 = vmatpush1.msra.mxu0 0.0
    %979 = vmatprep.subr.mxu0 0.0
    %980 = vmatpush1.msra.mxu0 0.0
    %981 = vmatprep.subr.mxu0 0.0
    %982 = vmatpush1.msra.mxu0 0.0
    %983 = vmatprep.mubr.f32.mxu0 0.0
    %984 = vmatmul.mubr.f32.gmra.mrb[0].mxu0 %v917
    %v985 = vpop.f32.mrb[0].mxu0
    %v986 = vadd.f32 0.0, %v985
    %v987 = vpop.f32.mrb[0].mxu0
    %988 = vdwg.mxu0
    %989 = vrot.lane.b32.xlu0 %v130, 112
    %v990 = vpop.permute.xlu0 %989
    %991 = vrot.lane.b32.xlu0 %v227, 112
    %v992 = vpop.permute.xlu0 %991
    %v993 = vsel %vm332, %v990, 0
    %v995 = vsel %vm332, %v992, 0
    %997 = vmatprep.subr.mxu0 0.0
    %998 = vmatpush1.xpose.msra.mxu0 %v995
    %999 = vmatprep.subr.mxu0 0.0
    %1000 = vmatpush1.xpose.msra.mxu0 0.0
    %1001 = vmatprep.subr.mxu0 0.0
    %1002 = vmatpush1.xpose.msra.mxu0 0.0
    %1003 = vmatprep.subr.mxu0 0.0
    %1004 = vmatpush1.xpose.msra.mxu0 0.0
    %1005 = vmatprep.subr.mxu0 0.0
    %1006 = vmatpush1.xpose.msra.mxu0 0.0
    %1007 = vmatprep.subr.mxu0 0.0
    %1008 = vmatpush1.xpose.msra.mxu0 0.0
    %1009 = vmatprep.subr.mxu0 0.0
    %1010 = vmatpush1.xpose.msra.mxu0 0.0
    %1011 = vmatprep.subr.mxu0 0.0
    %1012 = vmatpush1.xpose.msra.mxu0 0.0
    %1013 = vmatprep.subr.mxu0 0.0
    %1014 = vmatpush1.xpose.msra.mxu0 0.0
    %1015 = vmatprep.subr.mxu0 0.0
    %1016 = vmatpush1.xpose.msra.mxu0 0.0
    %1017 = vmatprep.subr.mxu0 0.0
    %1018 = vmatpush1.xpose.msra.mxu0 0.0
    %1019 = vmatprep.subr.mxu0 0.0
    %1020 = vmatpush1.xpose.msra.mxu0 0.0
    %1021 = vmatprep.subr.mxu0 0.0
    %1022 = vmatpush1.xpose.msra.mxu0 0.0
    %1023 = vmatprep.subr.mxu0 0.0
    %1024 = vmatpush1.xpose.msra.mxu0 0.0
    %1025 = vmatprep.subr.mxu0 0.0
    %1026 = vmatpush1.xpose.msra.mxu0 0.0
    %1027 = vmatprep.subr.mxu0 0.0
    %1028 = vmatpush1.xpose.msra.mxu0 0.0
    %1029 = vmatprep.subr.mxu0 0.0
    %1030 = vmatpush1.xpose.msra.mxu0 0.0
    %1031 = vmatprep.subr.mxu0 0.0
    %1032 = vmatpush1.xpose.msra.mxu0 0.0
    %1033 = vmatprep.subr.mxu0 0.0
    %1034 = vmatpush1.xpose.msra.mxu0 0.0
    %1035 = vmatprep.subr.mxu0 0.0
    %1036 = vmatpush1.xpose.msra.mxu0 0.0
    %1037 = vmatprep.subr.mxu0 0.0
    %1038 = vmatpush1.xpose.msra.mxu0 0.0
    %1039 = vmatprep.subr.mxu0 0.0
    %1040 = vmatpush1.xpose.msra.mxu0 0.0
    %1041 = vmatprep.subr.mxu0 0.0
    %1042 = vmatpush1.xpose.msra.mxu0 0.0
    %1043 = vmatprep.subr.mxu0 0.0
    %1044 = vmatpush1.xpose.msra.mxu0 0.0
    %1045 = vmatprep.subr.mxu0 0.0
    %1046 = vmatpush1.xpose.msra.mxu0 0.0
    %1047 = vmatprep.subr.mxu0 0.0
    %1048 = vmatpush1.xpose.msra.mxu0 0.0
    %1049 = vmatprep.subr.mxu0 0.0
    %1050 = vmatpush1.xpose.msra.mxu0 0.0
    %1051 = vmatprep.subr.mxu0 0.0
    %1052 = vmatpush1.xpose.msra.mxu0 0.0
    %1053 = vmatprep.subr.mxu0 0.0
    %1054 = vmatpush1.xpose.msra.mxu0 0.0
    %1055 = vmatprep.subr.mxu0 0.0
    %1056 = vmatpush1.xpose.msra.mxu0 0.0
    %1057 = vmatprep.subr.mxu0 0.0
    %1058 = vmatpush1.xpose.msra.mxu0 0.0
    %1059 = vmatprep.subr.mxu0 0.0
    %1060 = vmatpush1.xpose.msra.mxu0 0.0
    %1061 = vmatprep.mubr.f32.mxu0 0.0
    %1062 = vmatmul.mubr.f32.gmra.mrb[0].mxu0 %v993
    %v1063 = vpop.f32.mrb[0].mxu0
    %v1064 = vadd.f32 0.0, %v1063
    %v1065 = vpop.f32.mrb[0].mxu0
    %1066 = vdwg.mxu0
    %1067 = vrot.lane.b32.xlu0 %v135, 112
    %v1068 = vpop.permute.xlu0 %1067
    %1069 = vrot.lane.b32.xlu0 %v232, 112
    %v1070 = vpop.permute.xlu0 %1069
    %v1071 = vsel %vm332, %v1068, 0
    %v1073 = vsel %vm332, %v1070, 0
    %1075 = vmatprep.subr.mxu0 0.0
    %1076 = vmatpush1.xpose.msra.mxu0 %v1073
    %1077 = vmatprep.subr.mxu0 0.0
    %1078 = vmatpush1.xpose.msra.mxu0 0.0
    %1079 = vmatprep.subr.mxu0 0.0
    %1080 = vmatpush1.xpose.msra.mxu0 0.0
    %1081 = vmatprep.subr.mxu0 0.0
    %1082 = vmatpush1.xpose.msra.mxu0 0.0
    %1083 = vmatprep.subr.mxu0 0.0
    %1084 = vmatpush1.xpose.msra.mxu0 0.0
    %1085 = vmatprep.subr.mxu0 0.0
    %1086 = vmatpush1.xpose.msra.mxu0 0.0
    %1087 = vmatprep.subr.mxu0 0.0
    %1088 = vmatpush1.xpose.msra.mxu0 0.0
    %1089 = vmatprep.subr.mxu0 0.0
    %1090 = vmatpush1.xpose.msra.mxu0 0.0
    %1091 = vmatprep.subr.mxu0 0.0
    %1092 = vmatpush1.xpose.msra.mxu0 0.0
    %1093 = vmatprep.subr.mxu0 0.0
    %1094 = vmatpush1.xpose.msra.mxu0 0.0
    %1095 = vmatprep.subr.mxu0 0.0
    %1096 = vmatpush1.xpose.msra.mxu0 0.0
    %1097 = vmatprep.subr.mxu0 0.0
    %1098 = vmatpush1.xpose.msra.mxu0 0.0
    %1099 = vmatprep.subr.mxu0 0.0
    %1100 = vmatpush1.xpose.msra.mxu0 0.0
    %1101 = vmatprep.subr.mxu0 0.0
    %1102 = vmatpush1.xpose.msra.mxu0 0.0
    %1103 = vmatprep.subr.mxu0 0.0
    %1104 = vmatpush1.xpose.msra.mxu0 0.0
    %1105 = vmatprep.subr.mxu0 0.0
    %1106 = vmatpush1.xpose.msra.mxu0 0.0
    %1107 = vmatprep.subr.mxu0 0.0
    %1108 = vmatpush1.xpose.msra.mxu0 0.0
    %1109 = vmatprep.subr.mxu0 0.0
    %1110 = vmatpush1.xpose.msra.mxu0 0.0
    %1111 = vmatprep.subr.mxu0 0.0
    %1112 = vmatpush1.xpose.msra.mxu0 0.0
    %1113 = vmatprep.subr.mxu0 0.0
    %1114 = vmatpush1.xpose.msra.mxu0 0.0
    %1115 = vmatprep.subr.mxu0 0.0
    %1116 = vmatpush1.xpose.msra.mxu0 0.0
    %1117 = vmatprep.subr.mxu0 0.0
    %1118 = vmatpush1.xpose.msra.mxu0 0.0
    %1119 = vmatprep.subr.mxu0 0.0
    %1120 = vmatpush1.xpose.msra.mxu0 0.0
    %1121 = vmatprep.subr.mxu0 0.0
    %1122 = vmatpush1.xpose.msra.mxu0 0.0
    %1123 = vmatprep.subr.mxu0 0.0
    %1124 = vmatpush1.xpose.msra.mxu0 0.0
    %1125 = vmatprep.subr.mxu0 0.0
    %1126 = vmatpush1.xpose.msra.mxu0 0.0
    %1127 = vmatprep.subr.mxu0 0.0
    %1128 = vmatpush1.xpose.msra.mxu0 0.0
    %1129 = vmatprep.subr.mxu0 0.0
    %1130 = vmatpush1.xpose.msra.mxu0 0.0
    %1131 = vmatprep.subr.mxu0 0.0
    %1132 = vmatpush1.xpose.msra.mxu0 0.0
    %1133 = vmatprep.subr.mxu0 0.0
    %1134 = vmatpush1.xpose.msra.mxu0 0.0
    %1135 = vmatprep.subr.mxu0 0.0
    %1136 = vmatpush1.xpose.msra.mxu0 0.0
    %1137 = vmatprep.subr.mxu0 0.0
    %1138 = vmatpush1.xpose.msra.mxu0 0.0
    %1139 = vmatprep.mubr.f32.mxu0 0.0
    %1140 = vmatmul.mubr.f32.gmra.mrb[0].mxu0 %v1071
    %v1141 = vpop.f32.mrb[0].mxu0
    %v1142 = vadd.f32 0.0, %v1141
    %v1143 = vpop.f32.mrb[0].mxu0
    %1144 = vdwg.mxu0
    %v1145 = vmul.f32 %v1064, 0.35355338
    %v1146 = vmul.f32 %v1142, 0.35355338
    %v1147 = vsel %vm332, %v1145, -inf
    %1148 = vmax.xlane.f32.xlu0 %v1147
    %v1149 = vpop.xlane.xlu0 %1148
    %v1150 = vsel %vm332, %v1146, -inf
    %1151 = vmax.xlane.f32.xlu0 %v1150
    %v1152 = vpop.xlane.xlu0 %1151
    %v1153 = vsub.f32 %v1145, %v1149
    %v1154 = vsub.f32 %v1146, %v1152
    %v1155 = vmul.f32 %v1153, 1.442695
    %v1156 = vpow.pop %v1155
    %v1157 = vmul.f32 %v1154, 1.442695
    %v1158 = vpow.pop %v1157
    %v1159 = vsel %vm332, %v1156, 0.0
    %1160 = vadd.xlane.f32.xlu0 %v1159
    %v1161 = vpop.xlane.xlu0 %1160
    %v1162 = vsel %vm332, %v1158, 0.0
    %1163 = vadd.xlane.f32.xlu0 %v1162
    %v1164 = vpop.xlane.xlu0 %1163
    %v1165 = vrcp.pop %v1161
    %v1166 = vrcp.pop %v1164
    %v1167 = vmul.f32 %v1156, %v1165
    %v1168 = vmul.f32 %v1158, %v1166
    %1169 = vrot.lane.b32.xlu0 %v324, 112
    %v1170 = vpop.permute.xlu0 %1169
    %v1173 = vsel %vm332, %v1167, 0
    %1175 = vmatprep.subr.mxu0 0.0
    %1176 = vmatpush1.msra.mxu0 %v1170
    %1177 = vmatprep.subr.mxu0 0.0
    %1178 = vmatpush1.msra.mxu0 0.0
    %1179 = vmatprep.subr.mxu0 0.0
    %1180 = vmatpush1.msra.mxu0 0.0
    %1181 = vmatprep.subr.mxu0 0.0
    %1182 = vmatpush1.msra.mxu0 0.0
    %1183 = vmatprep.subr.mxu0 0.0
    %1184 = vmatpush1.msra.mxu0 0.0
    %1185 = vmatprep.subr.mxu0 0.0
    %1186 = vmatpush1.msra.mxu0 0.0
    %1187 = vmatprep.subr.mxu0 0.0
    %1188 = vmatpush1.msra.mxu0 0.0
    %1189 = vmatprep.subr.mxu0 0.0
    %1190 = vmatpush1.msra.mxu0 0.0
    %1191 = vmatprep.subr.mxu0 0.0
    %1192 = vmatpush1.msra.mxu0 0.0
    %1193 = vmatprep.subr.mxu0 0.0
    %1194 = vmatpush1.msra.mxu0 0.0
    %1195 = vmatprep.subr.mxu0 0.0
    %1196 = vmatpush1.msra.mxu0 0.0
    %1197 = vmatprep.subr.mxu0 0.0
    %1198 = vmatpush1.msra.mxu0 0.0
    %1199 = vmatprep.subr.mxu0 0.0
    %1200 = vmatpush1.msra.mxu0 0.0
    %1201 = vmatprep.subr.mxu0 0.0
    %1202 = vmatpush1.msra.mxu0 0.0
    %1203 = vmatprep.subr.mxu0 0.0
    %1204 = vmatpush1.msra.mxu0 0.0
    %1205 = vmatprep.subr.mxu0 0.0
    %1206 = vmatpush1.msra.mxu0 0.0
    %1207 = vmatprep.subr.mxu0 0.0
    %1208 = vmatpush1.msra.mxu0 0.0
    %1209 = vmatprep.subr.mxu0 0.0
    %1210 = vmatpush1.msra.mxu0 0.0
    %1211 = vmatprep.subr.mxu0 0.0
    %1212 = vmatpush1.msra.mxu0 0.0
    %1213 = vmatprep.subr.mxu0 0.0
    %1214 = vmatpush1.msra.mxu0 0.0
    %1215 = vmatprep.subr.mxu0 0.0
    %1216 = vmatpush1.msra.mxu0 0.0
    %1217 = vmatprep.subr.mxu0 0.0
    %1218 = vmatpush1.msra.mxu0 0.0
    %1219 = vmatprep.subr.mxu0 0.0
    %1220 = vmatpush1.msra.mxu0 0.0
    %1221 = vmatprep.subr.mxu0 0.0
    %1222 = vmatpush1.msra.mxu0 0.0
    %1223 = vmatprep.subr.mxu0 0.0
    %1224 = vmatpush1.msra.mxu0 0.0
    %1225 = vmatprep.subr.mxu0 0.0
    %1226 = vmatpush1.msra.mxu0 0.0
    %1227 = vmatprep.subr.mxu0 0.0
    %1228 = vmatpush1.msra.mxu0 0.0
    %1229 = vmatprep.subr.mxu0 0.0
    %1230 = vmatpush1.msra.mxu0 0.0
    %1231 = vmatprep.subr.mxu0 0.0
    %1232 = vmatpush1.msra.mxu0 0.0
    %1233 = vmatprep.subr.mxu0 0.0
    %1234 = vmatpush1.msra.mxu0 0.0
    %1235 = vmatprep.subr.mxu0 0.0
    %1236 = vmatpush1.msra.mxu0 0.0
    %1237 = vmatprep.subr.mxu0 0.0
    %1238 = vmatpush1.msra.mxu0 0.0
    %1239 = vmatprep.mubr.f32.mxu0 0.0
    %1240 = vmatmul.mubr.f32.gmra.mrb[0].mxu0 %v1173
    %v1241 = vpop.f32.mrb[0].mxu0
    %v1242 = vadd.f32 0.0, %v1241
    %v1243 = vpop.f32.mrb[0].mxu0
    %1244 = vdwg.mxu0
    %1245 = vrot.lane.b32.xlu0 %v329, 112
    %v1246 = vpop.permute.xlu0 %1245
    %v1249 = vsel %vm332, %v1168, 0
    %1251 = vmatprep.subr.mxu0 0.0
    %1252 = vmatpush1.msra.mxu0 %v1246
    %1253 = vmatprep.subr.mxu0 0.0
    %1254 = vmatpush1.msra.mxu0 0.0
    %1255 = vmatprep.subr.mxu0 0.0
    %1256 = vmatpush1.msra.mxu0 0.0
    %1257 = vmatprep.subr.mxu0 0.0
    %1258 = vmatpush1.msra.mxu0 0.0
    %1259 = vmatprep.subr.mxu0 0.0
    %1260 = vmatpush1.msra.mxu0 0.0
    %1261 = vmatprep.subr.mxu0 0.0
    %1262 = vmatpush1.msra.mxu0 0.0
    %1263 = vmatprep.subr.mxu0 0.0
    %1264 = vmatpush1.msra.mxu0 0.0
    %1265 = vmatprep.subr.mxu0 0.0
    %1266 = vmatpush1.msra.mxu0 0.0
    %1267 = vmatprep.subr.mxu0 0.0
    %1268 = vmatpush1.msra.mxu0 0.0
    %1269 = vmatprep.subr.mxu0 0.0
    %1270 = vmatpush1.msra.mxu0 0.0
    %1271 = vmatprep.subr.mxu0 0.0
    %1272 = vmatpush1.msra.mxu0 0.0
    %1273 = vmatprep.subr.mxu0 0.0
    %1274 = vmatpush1.msra.mxu0 0.0
    %1275 = vmatprep.subr.mxu0 0.0
    %1276 = vmatpush1.msra.mxu0 0.0
    %1277 = vmatprep.subr.mxu0 0.0
    %1278 = vmatpush1.msra.mxu0 0.0
    %1279 = vmatprep.subr.mxu0 0.0
    %1280 = vmatpush1.msra.mxu0 0.0
    %1281 = vmatprep.subr.mxu0 0.0
    %1282 = vmatpush1.msra.mxu0 0.0
    %1283 = vmatprep.subr.mxu0 0.0
    %1284 = vmatpush1.msra.mxu0 0.0
    %1285 = vmatprep.subr.mxu0 0.0
    %1286 = vmatpush1.msra.mxu0 0.0
    %1287 = vmatprep.subr.mxu0 0.0
    %1288 = vmatpush1.msra.mxu0 0.0
    %1289 = vmatprep.subr.mxu0 0.0
    %1290 = vmatpush1.msra.mxu0 0.0
    %1291 = vmatprep.subr.mxu0 0.0
    %1292 = vmatpush1.msra.mxu0 0.0
    %1293 = vmatprep.subr.mxu0 0.0
    %1294 = vmatpush1.msra.mxu0 0.0
    %1295 = vmatprep.subr.mxu0 0.0
    %1296 = vmatpush1.msra.mxu0 0.0
    %1297 = vmatprep.subr.mxu0 0.0
    %1298 = vmatpush1.msra.mxu0 0.0
    %1299 = vmatprep.subr.mxu0 0.0
    %1300 = vmatpush1.msra.mxu0 0.0
    %1301 = vmatprep.subr.mxu0 0.0
    %1302 = vmatpush1.msra.mxu0 0.0
    %1303 = vmatprep.subr.mxu0 0.0
    %1304 = vmatpush1.msra.mxu0 0.0
    %1305 = vmatprep.subr.mxu0 0.0
    %1306 = vmatpush1.msra.mxu0 0.0
    %1307 = vmatprep.subr.mxu0 0.0
    %1308 = vmatpush1.msra.mxu0 0.0
    %1309 = vmatprep.subr.mxu0 0.0
    %1310 = vmatpush1.msra.mxu0 0.0
    %1311 = vmatprep.subr.mxu0 0.0
    %1312 = vmatpush1.msra.mxu0 0.0
    %1313 = vmatprep.subr.mxu0 0.0
    %1314 = vmatpush1.msra.mxu0 0.0
    %1315 = vmatprep.mubr.f32.mxu0 0.0
    %1316 = vmatmul.mubr.f32.gmra.mrb[0].mxu0 %v1249
    %v1317 = vpop.f32.mrb[0].mxu0
    %v1318 = vadd.f32 0.0, %v1317
    %v1319 = vpop.f32.mrb[0].mxu0
    %1320 = vdwg.mxu0
    %1321 = vrot.lane.b32.xlu0 %v130, 104
    %v1322 = vpop.permute.xlu0 %1321
    %1323 = vrot.lane.b32.xlu0 %v227, 104
    %v1324 = vpop.permute.xlu0 %1323
    %v1325 = vsel %vm332, %v1322, 0
    %v1327 = vsel %vm332, %v1324, 0
    %1329 = vmatprep.subr.mxu0 0.0
    %1330 = vmatpush1.xpose.msra.mxu0 %v1327
    %1331 = vmatprep.subr.mxu0 0.0
    %1332 = vmatpush1.xpose.msra.mxu0 0.0
    %1333 = vmatprep.subr.mxu0 0.0
    %1334 = vmatpush1.xpose.msra.mxu0 0.0
    %1335 = vmatprep.subr.mxu0 0.0
    %1336 = vmatpush1.xpose.msra.mxu0 0.0
    %1337 = vmatprep.subr.mxu0 0.0
    %1338 = vmatpush1.xpose.msra.mxu0 0.0
    %1339 = vmatprep.subr.mxu0 0.0
    %1340 = vmatpush1.xpose.msra.mxu0 0.0
    %1341 = vmatprep.subr.mxu0 0.0
    %1342 = vmatpush1.xpose.msra.mxu0 0.0
    %1343 = vmatprep.subr.mxu0 0.0
    %1344 = vmatpush1.xpose.msra.mxu0 0.0
    %1345 = vmatprep.subr.mxu0 0.0
    %1346 = vmatpush1.xpose.msra.mxu0 0.0
    %1347 = vmatprep.subr.mxu0 0.0
    %1348 = vmatpush1.xpose.msra.mxu0 0.0
    %1349 = vmatprep.subr.mxu0 0.0
    %1350 = vmatpush1.xpose.msra.mxu0 0.0
    %1351 = vmatprep.subr.mxu0 0.0
    %1352 = vmatpush1.xpose.msra.mxu0 0.0
    %1353 = vmatprep.subr.mxu0 0.0
    %1354 = vmatpush1.xpose.msra.mxu0 0.0
    %1355 = vmatprep.subr.mxu0 0.0
    %1356 = vmatpush1.xpose.msra.mxu0 0.0
    %1357 = vmatprep.subr.mxu0 0.0
    %1358 = vmatpush1.xpose.msra.mxu0 0.0
    %1359 = vmatprep.subr.mxu0 0.0
    %1360 = vmatpush1.xpose.msra.mxu0 0.0
    %1361 = vmatprep.subr.mxu0 0.0
    %1362 = vmatpush1.xpose.msra.mxu0 0.0
    %1363 = vmatprep.subr.mxu0 0.0
    %1364 = vmatpush1.xpose.msra.mxu0 0.0
    %1365 = vmatprep.subr.mxu0 0.0
    %1366 = vmatpush1.xpose.msra.mxu0 0.0
    %1367 = vmatprep.subr.mxu0 0.0
    %1368 = vmatpush1.xpose.msra.mxu0 0.0
    %1369 = vmatprep.subr.mxu0 0.0
    %1370 = vmatpush1.xpose.msra.mxu0 0.0
    %1371 = vmatprep.subr.mxu0 0.0
    %1372 = vmatpush1.xpose.msra.mxu0 0.0
    %1373 = vmatprep.subr.mxu0 0.0
    %1374 = vmatpush1.xpose.msra.mxu0 0.0
    %1375 = vmatprep.subr.mxu0 0.0
    %1376 = vmatpush1.xpose.msra.mxu0 0.0
    %1377 = vmatprep.subr.mxu0 0.0
    %1378 = vmatpush1.xpose.msra.mxu0 0.0
    %1379 = vmatprep.subr.mxu0 0.0
    %1380 = vmatpush1.xpose.msra.mxu0 0.0
    %1381 = vmatprep.subr.mxu0 0.0
    %1382 = vmatpush1.xpose.msra.mxu0 0.0
    %1383 = vmatprep.subr.mxu0 0.0
    %1384 = vmatpush1.xpose.msra.mxu0 0.0
    %1385 = vmatprep.subr.mxu0 0.0
    %1386 = vmatpush1.xpose.msra.mxu0 0.0
    %1387 = vmatprep.subr.mxu0 0.0
    %1388 = vmatpush1.xpose.msra.mxu0 0.0
    %1389 = vmatprep.subr.mxu0 0.0
    %1390 = vmatpush1.xpose.msra.mxu0 0.0
    %1391 = vmatprep.subr.mxu0 0.0
    %1392 = vmatpush1.xpose.msra.mxu0 0.0
    %1393 = vmatprep.mubr.f32.mxu0 0.0
    %1394 = vmatmul.mubr.f32.gmra.mrb[0].mxu0 %v1325
    %v1395 = vpop.f32.mrb[0].mxu0
    %v1396 = vadd.f32 0.0, %v1395
    %v1397 = vpop.f32.mrb[0].mxu0
    %1398 = vdwg.mxu0
    %1399 = vrot.lane.b32.xlu0 %v135, 104
    %v1400 = vpop.permute.xlu0 %1399
    %1401 = vrot.lane.b32.xlu0 %v232, 104
    %v1402 = vpop.permute.xlu0 %1401
    %v1403 = vsel %vm332, %v1400, 0
    %v1405 = vsel %vm332, %v1402, 0
    %1407 = vmatprep.subr.mxu0 0.0
    %1408 = vmatpush1.xpose.msra.mxu0 %v1405
    %1409 = vmatprep.subr.mxu0 0.0
    %1410 = vmatpush1.xpose.msra.mxu0 0.0
    %1411 = vmatprep.subr.mxu0 0.0
    %1412 = vmatpush1.xpose.msra.mxu0 0.0
    %1413 = vmatprep.subr.mxu0 0.0
    %1414 = vmatpush1.xpose.msra.mxu0 0.0
    %1415 = vmatprep.subr.mxu0 0.0
    %1416 = vmatpush1.xpose.msra.mxu0 0.0
    %1417 = vmatprep.subr.mxu0 0.0
    %1418 = vmatpush1.xpose.msra.mxu0 0.0
    %1419 = vmatprep.subr.mxu0 0.0
    %1420 = vmatpush1.xpose.msra.mxu0 0.0
    %1421 = vmatprep.subr.mxu0 0.0
    %1422 = vmatpush1.xpose.msra.mxu0 0.0
    %1423 = vmatprep.subr.mxu0 0.0
    %1424 = vmatpush1.xpose.msra.mxu0 0.0
    %1425 = vmatprep.subr.mxu0 0.0
    %1426 = vmatpush1.xpose.msra.mxu0 0.0
    %1427 = vmatprep.subr.mxu0 0.0
    %1428 = vmatpush1.xpose.msra.mxu0 0.0
    %1429 = vmatprep.subr.mxu0 0.0
    %1430 = vmatpush1.xpose.msra.mxu0 0.0
    %1431 = vmatprep.subr.mxu0 0.0
    %1432 = vmatpush1.xpose.msra.mxu0 0.0
    %1433 = vmatprep.subr.mxu0 0.0
    %1434 = vmatpush1.xpose.msra.mxu0 0.0
    %1435 = vmatprep.subr.mxu0 0.0
    %1436 = vmatpush1.xpose.msra.mxu0 0.0
    %1437 = vmatprep.subr.mxu0 0.0
    %1438 = vmatpush1.xpose.msra.mxu0 0.0
    %1439 = vmatprep.subr.mxu0 0.0
    %1440 = vmatpush1.xpose.msra.mxu0 0.0
    %1441 = vmatprep.subr.mxu0 0.0
    %1442 = vmatpush1.xpose.msra.mxu0 0.0
    %1443 = vmatprep.subr.mxu0 0.0
    %1444 = vmatpush1.xpose.msra.mxu0 0.0
    %1445 = vmatprep.subr.mxu0 0.0
    %1446 = vmatpush1.xpose.msra.mxu0 0.0
    %1447 = vmatprep.subr.mxu0 0.0
    %1448 = vmatpush1.xpose.msra.mxu0 0.0
    %1449 = vmatprep.subr.mxu0 0.0
    %1450 = vmatpush1.xpose.msra.mxu0 0.0
    %1451 = vmatprep.subr.mxu0 0.0
    %1452 = vmatpush1.xpose.msra.mxu0 0.0
    %1453 = vmatprep.subr.mxu0 0.0
    %1454 = vmatpush1.xpose.msra.mxu0 0.0
    %1455 = vmatprep.subr.mxu0 0.0
    %1456 = vmatpush1.xpose.msra.mxu0 0.0
    %1457 = vmatprep.subr.mxu0 0.0
    %1458 = vmatpush1.xpose.msra.mxu0 0.0
    %1459 = vmatprep.subr.mxu0 0.0
    %1460 = vmatpush1.xpose.msra.mxu0 0.0
    %1461 = vmatprep.subr.mxu0 0.0
    %1462 = vmatpush1.xpose.msra.mxu0 0.0
    %1463 = vmatprep.subr.mxu0 0.0
    %1464 = vmatpush1.xpose.msra.mxu0 0.0
    %1465 = vmatprep.subr.mxu0 0.0
    %1466 = vmatpush1.xpose.msra.mxu0 0.0
    %1467 = vmatprep.subr.mxu0 0.0
    %1468 = vmatpush1.xpose.msra.mxu0 0.0
    %1469 = vmatprep.subr.mxu0 0.0
    %1470 = vmatpush1.xpose.msra.mxu0 0.0
    %1471 = vmatprep.mubr.f32.mxu0 0.0
    %1472 = vmatmul.mubr.f32.gmra.mrb[0].mxu0 %v1403
    %v1473 = vpop.f32.mrb[0].mxu0
    %v1474 = vadd.f32 0.0, %v1473
    %v1475 = vpop.f32.mrb[0].mxu0
    %1476 = vdwg.mxu0
    %v1477 = vmul.f32 %v1396, 0.35355338
    %v1478 = vmul.f32 %v1474, 0.35355338
    %v1479 = vsel %vm332, %v1477, -inf
    %1480 = vmax.xlane.f32.xlu0 %v1479
    %v1481 = vpop.xlane.xlu0 %1480
    %v1482 = vsel %vm332, %v1478, -inf
    %1483 = vmax.xlane.f32.xlu0 %v1482
    %v1484 = vpop.xlane.xlu0 %1483
    %v1485 = vsub.f32 %v1477, %v1481
    %v1486 = vsub.f32 %v1478, %v1484
    %v1487 = vmul.f32 %v1485, 1.442695
    %v1488 = vpow.pop %v1487
    %v1489 = vmul.f32 %v1486, 1.442695
    %v1490 = vpow.pop %v1489
    %v1491 = vsel %vm332, %v1488, 0.0
    %1492 = vadd.xlane.f32.xlu0 %v1491
    %v1493 = vpop.xlane.xlu0 %1492
    %v1494 = vsel %vm332, %v1490, 0.0
    %1495 = vadd.xlane.f32.xlu0 %v1494
    %v1496 = vpop.xlane.xlu0 %1495
    %v1497 = vrcp.pop %v1493
    %v1498 = vrcp.pop %v1496
    %v1499 = vmul.f32 %v1488, %v1497
    %v1500 = vmul.f32 %v1490, %v1498
    %1501 = vrot.lane.b32.xlu0 %v324, 104
    %v1502 = vpop.permute.xlu0 %1501
    %v1505 = vsel %vm332, %v1499, 0
    %1507 = vmatprep.subr.mxu0 0.0
    %1508 = vmatpush1.msra.mxu0 %v1502
    %1509 = vmatprep.subr.mxu0 0.0
    %1510 = vmatpush1.msra.mxu0 0.0
    %1511 = vmatprep.subr.mxu0 0.0
    %1512 = vmatpush1.msra.mxu0 0.0
    %1513 = vmatprep.subr.mxu0 0.0
    %1514 = vmatpush1.msra.mxu0 0.0
    %1515 = vmatprep.subr.mxu0 0.0
    %1516 = vmatpush1.msra.mxu0 0.0
    %1517 = vmatprep.subr.mxu0 0.0
    %1518 = vmatpush1.msra.mxu0 0.0
    %1519 = vmatprep.subr.mxu0 0.0
    %1520 = vmatpush1.msra.mxu0 0.0
    %1521 = vmatprep.subr.mxu0 0.0
    %1522 = vmatpush1.msra.mxu0 0.0
    %1523 = vmatprep.subr.mxu0 0.0
    %1524 = vmatpush1.msra.mxu0 0.0
    %1525 = vmatprep.subr.mxu0 0.0
    %1526 = vmatpush1.msra.mxu0 0.0
    %1527 = vmatprep.subr.mxu0 0.0
    %1528 = vmatpush1.msra.mxu0 0.0
    %1529 = vmatprep.subr.mxu0 0.0
    %1530 = vmatpush1.msra.mxu0 0.0
    %1531 = vmatprep.subr.mxu0 0.0
    %1532 = vmatpush1.msra.mxu0 0.0
    %1533 = vmatprep.subr.mxu0 0.0
    %1534 = vmatpush1.msra.mxu0 0.0
    %1535 = vmatprep.subr.mxu0 0.0
    %1536 = vmatpush1.msra.mxu0 0.0
    %1537 = vmatprep.subr.mxu0 0.0
    %1538 = vmatpush1.msra.mxu0 0.0
    %1539 = vmatprep.subr.mxu0 0.0
    %1540 = vmatpush1.msra.mxu0 0.0
    %1541 = vmatprep.subr.mxu0 0.0
    %1542 = vmatpush1.msra.mxu0 0.0
    %1543 = vmatprep.subr.mxu0 0.0
    %1544 = vmatpush1.msra.mxu0 0.0
    %1545 = vmatprep.subr.mxu0 0.0
    %1546 = vmatpush1.msra.mxu0 0.0
    %1547 = vmatprep.subr.mxu0 0.0
    %1548 = vmatpush1.msra.mxu0 0.0
    %1549 = vmatprep.subr.mxu0 0.0
    %1550 = vmatpush1.msra.mxu0 0.0
    %1551 = vmatprep.subr.mxu0 0.0
    %1552 = vmatpush1.msra.mxu0 0.0
    %1553 = vmatprep.subr.mxu0 0.0
    %1554 = vmatpush1.msra.mxu0 0.0
    %1555 = vmatprep.subr.mxu0 0.0
    %1556 = vmatpush1.msra.mxu0 0.0
    %1557 = vmatprep.subr.mxu0 0.0
    %1558 = vmatpush1.msra.mxu0 0.0
    %1559 = vmatprep.subr.mxu0 0.0
    %1560 = vmatpush1.msra.mxu0 0.0
    %1561 = vmatprep.subr.mxu0 0.0
    %1562 = vmatpush1.msra.mxu0 0.0
    %1563 = vmatprep.subr.mxu0 0.0
    %1564 = vmatpush1.msra.mxu0 0.0
    %1565 = vmatprep.subr.mxu0 0.0
    %1566 = vmatpush1.msra.mxu0 0.0
    %1567 = vmatprep.subr.mxu0 0.0
    %1568 = vmatpush1.msra.mxu0 0.0
    %1569 = vmatprep.subr.mxu0 0.0
    %1570 = vmatpush1.msra.mxu0 0.0
    %1571 = vmatprep.mubr.f32.mxu0 0.0
    %1572 = vmatmul.mubr.f32.gmra.mrb[0].mxu0 %v1505
    %v1573 = vpop.f32.mrb[0].mxu0
    %v1574 = vadd.f32 0.0, %v1573
    %v1575 = vpop.f32.mrb[0].mxu0
    %1576 = vdwg.mxu0
    %1577 = vrot.lane.b32.xlu0 %v329, 104
    %v1578 = vpop.permute.xlu0 %1577
    %v1581 = vsel %vm332, %v1500, 0
    %1583 = vmatprep.subr.mxu0 0.0
    %1584 = vmatpush1.msra.mxu0 %v1578
    %1585 = vmatprep.subr.mxu0 0.0
    %1586 = vmatpush1.msra.mxu0 0.0
    %1587 = vmatprep.subr.mxu0 0.0
    %1588 = vmatpush1.msra.mxu0 0.0
    %1589 = vmatprep.subr.mxu0 0.0
    %1590 = vmatpush1.msra.mxu0 0.0
    %1591 = vmatprep.subr.mxu0 0.0
    %1592 = vmatpush1.msra.mxu0 0.0
    %1593 = vmatprep.subr.mxu0 0.0
    %1594 = vmatpush1.msra.mxu0 0.0
    %1595 = vmatprep.subr.mxu0 0.0
    %1596 = vmatpush1.msra.mxu0 0.0
    %1597 = vmatprep.subr.mxu0 0.0
    %1598 = vmatpush1.msra.mxu0 0.0
    %1599 = vmatprep.subr.mxu0 0.0
    %1600 = vmatpush1.msra.mxu0 0.0
    %1601 = vmatprep.subr.mxu0 0.0
    %1602 = vmatpush1.msra.mxu0 0.0
    %1603 = vmatprep.subr.mxu0 0.0
    %1604 = vmatpush1.msra.mxu0 0.0
    %1605 = vmatprep.subr.mxu0 0.0
    %1606 = vmatpush1.msra.mxu0 0.0
    %1607 = vmatprep.subr.mxu0 0.0
    %1608 = vmatpush1.msra.mxu0 0.0
    %1609 = vmatprep.subr.mxu0 0.0
    %1610 = vmatpush1.msra.mxu0 0.0
    %1611 = vmatprep.subr.mxu0 0.0
    %1612 = vmatpush1.msra.mxu0 0.0
    %1613 = vmatprep.subr.mxu0 0.0
    %1614 = vmatpush1.msra.mxu0 0.0
    %1615 = vmatprep.subr.mxu0 0.0
    %1616 = vmatpush1.msra.mxu0 0.0
    %1617 = vmatprep.subr.mxu0 0.0
    %1618 = vmatpush1.msra.mxu0 0.0
    %1619 = vmatprep.subr.mxu0 0.0
    %1620 = vmatpush1.msra.mxu0 0.0
    %1621 = vmatprep.subr.mxu0 0.0
    %1622 = vmatpush1.msra.mxu0 0.0
    %1623 = vmatprep.subr.mxu0 0.0
    %1624 = vmatpush1.msra.mxu0 0.0
    %1625 = vmatprep.subr.mxu0 0.0
    %1626 = vmatpush1.msra.mxu0 0.0
    %1627 = vmatprep.subr.mxu0 0.0
    %1628 = vmatpush1.msra.mxu0 0.0
    %1629 = vmatprep.subr.mxu0 0.0
    %1630 = vmatpush1.msra.mxu0 0.0
    %1631 = vmatprep.subr.mxu0 0.0
    %1632 = vmatpush1.msra.mxu0 0.0
    %1633 = vmatprep.subr.mxu0 0.0
    %1634 = vmatpush1.msra.mxu0 0.0
    %1635 = vmatprep.subr.mxu0 0.0
    %1636 = vmatpush1.msra.mxu0 0.0
    %1637 = vmatprep.subr.mxu0 0.0
    %1638 = vmatpush1.msra.mxu0 0.0
    %1639 = vmatprep.subr.mxu0 0.0
    %1640 = vmatpush1.msra.mxu0 0.0
    %1641 = vmatprep.subr.mxu0 0.0
    %1642 = vmatpush1.msra.mxu0 0.0
    %1643 = vmatprep.subr.mxu0 0.0
    %1644 = vmatpush1.msra.mxu0 0.0
    %1645 = vmatprep.subr.mxu0 0.0
    %1646 = vmatpush1.msra.mxu0 0.0
    %1647 = vmatprep.mubr.f32.mxu0 0.0
    %1648 = vmatmul.mubr.f32.gmra.mrb[0].mxu0 %v1581
    %v1649 = vpop.f32.mrb[0].mxu0
    %v1650 = vadd.f32 0.0, %v1649
    %v1651 = vpop.f32.mrb[0].mxu0
    %1652 = vdwg.mxu0
    %1655 = vrot.lane.b32.xlu0 %v909, 8
    %v1656 = vpop.permute.xlu0 %1655
    %1657 = vrot.lane.b32.xlu0 %v986, 8
    %v1658 = vpop.permute.xlu0 %1657
    %1663 = vrot.lane.b32.xlu0 %v1242, 16
    %v1664 = vpop.permute.xlu0 %1663
    %1665 = vrot.lane.b32.xlu0 %v1318, 16
    %v1666 = vpop.permute.xlu0 %1665
    %1671 = vrot.lane.b32.xlu0 %v1574, 24
    %v1672 = vpop.permute.xlu0 %1671
    %1673 = vrot.lane.b32.xlu0 %v1650, 24
    %v1674 = vpop.permute.xlu0 %1673
    %v1677 = vsel %vm332, %v579, %v1656
    %v1678 = vsel %vm332, %v652, %v1658
    %vm1679 = vcmask 130048
    %v1680 = vsel %vm1679, %v1677, %v1664
    %v1681 = vsel %vm1679, %v1678, %v1666
    %vm1682 = vcmask 195584
    %v1683 = vsel %vm1682, %v1680, %v1672
    %v1684 = vsel %vm1682, %v1681, %v1674
    %s1685 = scalar_lea.vmem [#allocation5], 96
    %v1686 = vld [vmem:[%s1685] sm:$0xff]
    %v1687 = vld [vmem:[%s1685 + $0x8] sm:$0xff]
    %v1688 = vld [vmem:[%s1685 + $0x10] sm:$0xff]
    %v1689 = vld [vmem:[%s1685 + $0x18] sm:$0xff]
    %s1690 = scalar_lea.vmem %s2, 3
    %v1691 = vld [vmem:[%s1690] sm:$0x1]
    %v1693 = vlaneseq
    %v1694 = vshrl.u32 %v1693, 7
    %v1695 = vsub.s32 0, %v1694
    %v1696 = vrot.slane %v1691, %v1695
    %v1699 = vsel %vm56, %v1683, 0
    %v1702 = vsel %vm56, %v1684, 0
    %1704 = vmatprep.subr.mxu0 0.0
    %1705 = vmatpush1.msra.mxu0 %v1686
    %1706 = vmatprep.subr.mxu0 0.0
    %1707 = vmatpush1.msra.mxu0 %v1687
    %1708 = vmatprep.subr.mxu0 0.0
    %1709 = vmatpush1.msra.mxu0 %v1688
    %1710 = vmatprep.subr.mxu0 0.0
    %1711 = vmatpush1.msra.mxu0 %v1689
    %1712 = vmatprep.subr.mxu0 0.0
    %1713 = vmatpush1.msra.mxu0 0.0
    %1714 = vmatprep.subr.mxu0 0.0
    %1715 = vmatpush1.msra.mxu0 0.0
    %1716 = vmatprep.subr.mxu0 0.0
    %1717 = vmatpush1.msra.mxu0 0.0
    %1718 = vmatprep.subr.mxu0 0.0
    %1719 = vmatpush1.msra.mxu0 0.0
    %1720 = vmatprep.subr.mxu0 0.0
    %1721 = vmatpush1.msra.mxu0 0.0
    %1722 = vmatprep.subr.mxu0 0.0
    %1723 = vmatpush1.msra.mxu0 0.0
    %1724 = vmatprep.subr.mxu0 0.0
    %1725 = vmatpush1.msra.mxu0 0.0
    %1726 = vmatprep.subr.mxu0 0.0
    %1727 = vmatpush1.msra.mxu0 0.0
    %1728 = vmatprep.subr.mxu0 0.0
    %1729 = vmatpush1.msra.mxu0 0.0
    %1730 = vmatprep.subr.mxu0 0.0
    %1731 = vmatpush1.msra.mxu0 0.0
    %1732 = vmatprep.subr.mxu0 0.0
    %1733 = vmatpush1.msra.mxu0 0.0
    %1734 = vmatprep.subr.mxu0 0.0
    %1735 = vmatpush1.msra.mxu0 0.0
    %1736 = vmatprep.subr.mxu0 0.0
    %1737 = vmatpush1.msra.mxu0 0.0
    %1738 = vmatprep.subr.mxu0 0.0
    %1739 = vmatpush1.msra.mxu0 0.0
    %1740 = vmatprep.subr.mxu0 0.0
    %1741 = vmatpush1.msra.mxu0 0.0
    %1742 = vmatprep.subr.mxu0 0.0
    %1743 = vmatpush1.msra.mxu0 0.0
    %1744 = vmatprep.subr.mxu0 0.0
    %1745 = vmatpush1.msra.mxu0 0.0
    %1746 = vmatprep.subr.mxu0 0.0
    %1747 = vmatpush1.msra.mxu0 0.0
    %1748 = vmatprep.subr.mxu0 0.0
    %1749 = vmatpush1.msra.mxu0 0.0
    %1750 = vmatprep.subr.mxu0 0.0
    %1751 = vmatpush1.msra.mxu0 0.0
    %1752 = vmatprep.subr.mxu0 0.0
    %1753 = vmatpush1.msra.mxu0 0.0
    %1754 = vmatprep.subr.mxu0 0.0
    %1755 = vmatpush1.msra.mxu0 0.0
    %1756 = vmatprep.subr.mxu0 0.0
    %1757 = vmatpush1.msra.mxu0 0.0
    %1758 = vmatprep.subr.mxu0 0.0
    %1759 = vmatpush1.msra.mxu0 0.0
    %1760 = vmatprep.subr.mxu0 0.0
    %1761 = vmatpush1.msra.mxu0 0.0
    %1762 = vmatprep.subr.mxu0 0.0
    %1763 = vmatpush1.msra.mxu0 0.0
    %1764 = vmatprep.subr.mxu0 0.0
    %1765 = vmatpush1.msra.mxu0 0.0
    %1766 = vmatprep.subr.mxu0 0.0
    %1767 = vmatpush1.msra.mxu0 0.0
    %1768 = vmatprep.mubr.f32.mxu0 0.0
    %1769 = vmatmul.mubr.f32.gmra.mrb[0].mxu0 %v1699
    %v1770 = vpop.f32.mrb[0].mxu0
    %v1771 = vadd.f32 %v1696, %v1770
    %v1772 = vpop.f32.mrb[0].mxu0
    %1773 = vmatprep.mubr.f32.mxu0 0.0
    %1774 = vmatmul.mubr.f32.gmra.mrb[0].mxu0 %v1702
    %v1775 = vpop.f32.mrb[0].mxu0
    %v1776 = vadd.f32 %v1696, %v1775
    %v1777 = vpop.f32.mrb[0].mxu0
    %1778 = vdwg.mxu0
    %1779 = vst.msk [vmem:[#allocation7] sm:$0xff] %vm56, %v1771
    %1780 = vst.msk [vmem:[#allocation7 + $0x8] sm:$0xff] %vm56, %v1776
    // Predicated region
    $region22: #{tpu_custom_call.1} parent=1 // pred_check
      _
    $region23: #{tpu_custom_call.1} parent=1 // pred_check_branch
      %1782 = sbr.rel (0) target = $region25
    $region24: #{tpu_custom_call.1} parent=1 // pred_region
      %s1784 = ssub.s32 256, 256
      %1785 = vsyncadd [#allocation4], %s1784
      %s1786 = sshll.u32 [#allocation7], 4
      %s1787 = int_to_ptr.vmem [resolvable:$true] %s1786
      %1792 = dma.vmem_to_hbm [thread:$0]  %s1787, 256, %s3, [#allocation4], 128, 128, 8
    $region25: #{tpu_custom_call.1} parent=1 // pred_fallthru
      _
    // Predicated region
    $region26: #{tpu_custom_call.1} parent=1 // pred_check
      _
    $region27: #{tpu_custom_call.1} parent=1 // pred_check_branch
      %1794 = sbr.rel (0) target = $region29
    $region28: #{tpu_custom_call.1} parent=1 // pred_region
      %1795 = dma.done [#allocation4], 256
    $region29: #{tpu_custom_call.1} parent=1 // pred_fallthru
      _
    %1796 = vsyncpa [#allocation3], 1
    %1797 = vsyncpa [#allocation6], 1
    %1798 = vsyncpa [#allocation4], 1

</llo_original>
